<compile_context>
chip_gen: v5e
topology: v5e:2x2
jax: 0.10.0
libtpu: 0.0.40
codegen_flags: <defaults>
</compile_context>

<pallas_src>
import math
from functools import partial

import jax
import jax.numpy as jnp
from jax import lax
from jax.experimental import pallas as pl
from jax.experimental.pallas import tpu as pltpu

jax.config.update("jax_default_matmul_precision", "highest")

LANE = 128
SUBLANE = 8
TILE_N = 256                       # row tile (sized for v7x 64 MiB VMEM; fine on v5e/v6e)
COMPUTE_DTYPE = jnp.float32        # set to jnp.bfloat16 on v6e/v7x for extra MXU throughput


# ----------------------------------------------------------------------------- helpers
def _round_up(n, m):
    return (n + m - 1) // m * m


def _pad_axis_to(x, axis, target):
    pad = target - x.shape[axis]
    if pad == 0:
        return x
    widths = [(0, 0)] * x.ndim
    widths[axis] = (0, pad)
    return jnp.pad(x, widths)


def _pad_axis(x, axis, mult):
    return _pad_axis_to(x, axis, _round_up(x.shape[axis], mult))


def _im2col3x3(x):
    """[B, H, W, Ci] -> [B*H*W, 9*Ci] with tap order (ky, kx, ci); zero padding 1."""
    b, h, w, ci = x.shape
    xp = jnp.pad(x, ((0, 0), (1, 1), (1, 1), (0, 0)))
    cols = [xp[:, ky:ky + h, kx:kx + w, :] for ky in range(3) for kx in range(3)]
    return jnp.concatenate(cols, axis=-1).reshape(b * h * w, 9 * ci)


# ----------------------------------------------------------------- kernel 1: fused GEMM
def _gemm_bn_act_kernel(*refs, relu: bool, has_res: bool):
    if has_res:
        x_ref, w_ref, sc_ref, sh_ref, res_ref, o_ref = refs
    else:
        x_ref, w_ref, sc_ref, sh_ref, o_ref = refs
        res_ref = None
    y = jnp.dot(x_ref[...], w_ref[...], preferred_element_type=jnp.float32)
    y = y * sc_ref[...] + sh_ref[...]          # folded BatchNorm (or linear bias: scale=1)
    if relu:
        y = jnp.maximum(y, 0.0)
    if res_ref is not None:                    # fused residual add (fq = coordconv(fq) + fq)
        y = y + res_ref[...]
    o_ref[...] = y.astype(o_ref.dtype)


def fused_gemm(x, w, scale, shift, *, relu, residual=None, tile_n=TILE_N):
    """y = [relu](x @ w * scale + shift) [+ residual]; w/scale/shift already lane-padded."""
    n, _ = x.shape
    kdim, m = w.shape
    x = _pad_axis_to(x, 1, kdim)                               # zero-pad K to match weights
    tile = tile_n if n >= tile_n else _round_up(max(n, SUBLANE), SUBLANE)
    n_pad = _round_up(n, tile)
    x = _pad_axis_to(x, 0, n_pad).astype(COMPUTE_DTYPE)
    w = w.astype(COMPUTE_DTYPE)

    in_specs = [
        pl.BlockSpec((tile, kdim), lambda i: (i, 0)),          # activations, tiled over rows
        pl.BlockSpec((kdim, m), lambda i: (0, 0)),             # weights resident in VMEM
        pl.BlockSpec((1, m), lambda i: (0, 0)),                # BN scale resident
        pl.BlockSpec((1, m), lambda i: (0, 0)),                # BN shift / bias resident
    ]
    args = [x, w, scale, shift]
    if residual is not None:
        residual = _pad_axis_to(residual, 0, n_pad)
        in_specs.append(pl.BlockSpec((tile, m), lambda i: (i, 0)))
        args.append(residual)

    out = pl.pallas_call(
        partial(_gemm_bn_act_kernel, relu=relu, has_res=residual is not None),
        out_shape=jax.ShapeDtypeStruct((n_pad, m), jnp.float32),
        grid=(n_pad // tile,),
        in_specs=in_specs,
        out_specs=pl.BlockSpec((tile, m), lambda i: (i, 0)),
        compiler_params=pltpu.CompilerParams(dimension_semantics=("parallel",)),
    )(*args)
    return out[:n]


# -------------------------------------------- kernel 2: CrossAttn gates (len-1 memory)
def _gates_kernel(st_ref, wt_ref, bt_ref, wv_ref, bv_ref, wo_ref, bo_ref, o_ref, *, cp):
    # txt = txt_proj(state); gate_i = out_proj_i(v_proj_i(txt))  (softmax over 1 key == 1)
    txt = jnp.dot(st_ref[...], wt_ref[...], preferred_element_type=jnp.float32) + bt_ref[...]
    for i in range(3):                                   # static unroll over the 3 fusions
        h = jnp.dot(txt, wv_ref[i], preferred_element_type=jnp.float32) + bv_ref[i]
        g = jnp.dot(h, wo_ref[i], preferred_element_type=jnp.float32) + bo_ref[i]
        o_ref[:, i * cp:(i + 1) * cp] = g.astype(o_ref.dtype)


def fused_gates(state, wt, bt, wv, bv, wo, bo):
    bsz = state.shape[0]
    dp, cp = wt.shape
    state = _pad_axis_to(state, 1, dp)
    state = _pad_axis_to(state, 0, _round_up(max(bsz, SUBLANE), SUBLANE))
    vspec = pl.BlockSpec(memory_space=pltpu.VMEM)        # tiny: everything VMEM-resident
    out = pl.pallas_call(
        partial(_gates_kernel, cp=cp),
        out_shape=jax.ShapeDtypeStruct((state.shape[0], 3 * cp), jnp.float32),
        in_specs=[vspec] * 7,
        out_specs=vspec,
    )(state, wt, bt, wv, bv, wo, bo)
    return out[:bsz]


# ------------------------------------ kernel 3: gate-multiply + concat + aggr 1x1 conv
def _gated_aggr_kernel(v_ref, g_ref, w_ref, sc_ref, sh_ref, o_ref):
    x = v_ref[0] * g_ref[0]                              # (tile, 3Cp) * (1, 3Cp)  == tgt * tgt2
    y = jnp.dot(x, w_ref[...], preferred_element_type=jnp.float32)
    y = jnp.maximum(y * sc_ref[...] + sh_ref[...], 0.0)
    o_ref[0] = y.astype(o_ref.dtype)


def gated_aggr(vcat, gates, w, scale, shift, *, tile_hw=TILE_N):
    bsz, hw, k = vcat.shape
    m = w.shape[1]
    tile = tile_hw if hw >= tile_hw else _round_up(max(hw, SUBLANE), SUBLANE)
    hw_pad = _round_up(hw, tile)
    vcat = _pad_axis_to(vcat, 1, hw_pad)
    gates3 = gates.reshape(bsz, 1, k)
    out = pl.pallas_call(
        _gated_aggr_kernel,
        out_shape=jax.ShapeDtypeStruct((bsz, hw_pad, m), jnp.float32),
        grid=(bsz, hw_pad // tile),
        in_specs=[
            pl.BlockSpec((1, tile, k), lambda b, t: (b, t, 0)),   # concat(fq3,fq4,fq5)
            pl.BlockSpec((1, 1, k), lambda b, t: (b, 0, 0)),      # per-batch gates, resident per b
            pl.BlockSpec((k, m), lambda b, t: (0, 0)),            # aggr weight resident
            pl.BlockSpec((1, m), lambda b, t: (0, 0)),
            pl.BlockSpec((1, m), lambda b, t: (0, 0)),
        ],
        out_specs=pl.BlockSpec((1, tile, m), lambda b, t: (b, t, 0)),
        compiler_params=pltpu.CompilerParams(dimension_semantics=("parallel", "parallel")),
    )(vcat, gates3, w, scale, shift)
    return out[:, :hw]


# --------------------------------------------------------------------- parameter setup
def init_neck_params(key, *, c3in, c4in, c5in, c, d_txt):
    keys = iter(jax.random.split(key, 64))

    def conv_w(cout, cin, kh, kw):
        bound = 1.0 / math.sqrt(cin * kh * kw)
        return jax.random.uniform(next(keys), (cout, cin, kh, kw), jnp.float32, -bound, bound)

    def bn(cout):
        return dict(
            gamma=jax.random.uniform(next(keys), (cout,), jnp.float32, 0.5, 1.5),
            beta=0.1 * jax.random.normal(next(keys), (cout,), jnp.float32),
            mean=0.1 * jax.random.normal(next(keys), (cout,), jnp.float32),
            var=jax.random.uniform(next(keys), (cout,), jnp.float32, 0.5, 1.5),
        )

    def linear(cout, cin):
        bound = 1.0 / math.sqrt(cin)
        w = jax.random.uniform(next(keys), (cout, cin), jnp.float32, -bound, bound)
        b = jax.random.uniform(next(keys), (cout,), jnp.float32, -bound, bound)
        return w, b

    p = {}
    p['w3'] = conv_w(c, c3in, 2, 2); p['bn3'] = bn(c)                    # f3_proj
    p['w4'] = conv_w(c, c4in, 1, 1); p['bn4'] = bn(c)                    # f4_proj
    bound5 = 1.0 / math.sqrt(c5in * 4)                                   # f5_proj (ConvTranspose2d, [in,out,kh,kw])
    p['w5'] = jax.random.uniform(next(keys), (c5in, c, 2, 2), jnp.float32, -bound5, bound5)
    p['bn5'] = bn(c)
    p['wt'], p['bt'] = linear(c, d_txt)                                  # txt_proj
    for name in ('f3', 'f4', 'f5'):                                      # CrossAttn params
        wq, bq = linear(c, c); wk, bk = linear(c, c)
        wv, bv = linear(c, c); wo, bo = linear(c, c)
        p[f'attn_{name}'] = dict(wq=wq, bq=bq, wk=wk, bk=bk, wv=wv, bv=bv, wo=wo, bo=bo)
    p['wa'] = conv_w(c, 3 * c, 1, 1); p['bna'] = bn(c)                   # aggr
    p['wc1'] = conv_w(c, c + 2, 3, 3); p['bnc1'] = bn(c)                 # CoordConv conv
    p['wc2'] = conv_w(c, c, 3, 3); p['bnc2'] = bn(c)                     # second 3x3 conv
    return p


def _fold_bn(bn, eps=1e-5):
    scale = bn['gamma'] / jnp.sqrt(bn['var'] + eps)
    shift = bn['beta'] - bn['mean'] * scale
    return scale, shift


def prepare_kernel_params(p, *, c):
    """Fold BatchNorm, transpose to [K, M] matmul layout, zero-pad to 128 lanes."""
    cp = _round_up(c, LANE)

    def pad_mat(w):
        return _pad_axis(_pad_axis(w, 0, LANE), 1, LANE)

    def pad_vec(v):
        return _pad_axis(v.reshape(1, -1), 1, LANE)

    kp = {'c': c, 'cp': cp}
    # f3: k2/s2 conv == space-to-depth + matmul; K order (dy, dx, ci)
    s, h = _fold_bn(p['bn3'])
    kp['w3'] = pad_mat(p['w3'].transpose(2, 3, 1, 0).reshape(-1, c))
    kp['s3'], kp['h3'] = pad_vec(s), pad_vec(h)
    # f4: 1x1 conv
    s, h = _fold_bn(p['bn4'])
    kp['w4'] = pad_mat(p['w4'][:, :, 0, 0].T)
    kp['s4'], kp['h4'] = pad_vec(s), pad_vec(h)
    # f5: k2/s2 deconv == matmul + depth-to-space; M order (dy, dx, cout_padded)
    w5 = _pad_axis(p['w5'].transpose(0, 2, 3, 1), 3, LANE)               # [c5in, 2, 2, cp]
    kp['w5'] = _pad_axis(w5.reshape(w5.shape[0], -1), 0, LANE)
    s, h = _fold_bn(p['bn5'])
    kp['s5'] = jnp.tile(pad_vec(s), (1, 4))
    kp['h5'] = jnp.tile(pad_vec(h), (1, 4))
    # txt_proj + CrossAttn value/output projections (gates kernel)
    kp['wt'], kp['bt'] = pad_mat(p['wt'].T), pad_vec(p['bt'])
    wv, bv, wo, bo = [], [], [], []
    for name in ('f3', 'f4', 'f5'):
        a = p[f'attn_{name}']
        wv.append(pad_mat(a['wv'].T)); bv.append(pad_vec(a['bv']))
        wo.append(pad_mat(a['wo'].T)); bo.append(pad_vec(a['bo']))
    kp['wv'], kp['bv'] = jnp.stack(wv), jnp.stack(bv)
    kp['wo'], kp['bo'] = jnp.stack(wo), jnp.stack(bo)
    # aggr: 1x1 conv over concat(fq3, fq4, fq5); K = three padded Cp segments
    wa = p['wa'][:, :, 0, 0]
    wa_mat = jnp.concatenate([_pad_axis(wa[:, i * c:(i + 1) * c].T, 0, LANE) for i in range(3)], axis=0)
    s, h = _fold_bn(p['bna'])
    kp['wa'] = _pad_axis(wa_mat, 1, LANE)
    kp['sa'], kp['ha'] = pad_vec(s), pad_vec(h)
    # CoordConv / second conv: 3x3 via im2col; K order (ky, kx, ci)
    s, h = _fold_bn(p['bnc1'])
    kp['wc1'] = pad_mat(p['wc1'].transpose(2, 3, 1, 0).reshape(-1, c))
    kp['sc1'], kp['hc1'] = pad_vec(s), pad_vec(h)
    s, h = _fold_bn(p['bnc2'])
    kp['wc2'] = pad_mat(p['wc2'].transpose(2, 3, 1, 0).reshape(-1, c))
    kp['sc2'], kp['hc2'] = pad_vec(s), pad_vec(h)
    return kp


# ------------------------------------------------------------------------ Pallas forward
def neck_forward_pallas(kp, v3, v4, v5, state):
    c, cp = kp['c'], kp['cp']
    b = v3.shape[0]

    # f3_proj: kernel-2/stride-2 conv -> space-to-depth + fused matmul/BN/ReLU
    x3 = jnp.transpose(v3, (0, 2, 3, 1))
    _, h3, w3s, c3in = x3.shape
    ho, wo = h3 // 2, w3s // 2
    x3 = x3.reshape(b, ho, 2, wo, 2, c3in).transpose(0, 1, 3, 2, 4, 5).reshape(b * ho * wo, 4 * c3in)
    fq3 = fused_gemm(x3, kp['w3'], kp['s3'], kp['h3'], relu=True).reshape(b, ho, wo, cp)

    # f4_proj: 1x1 conv
    x4 = jnp.transpose(v4, (0, 2, 3, 1))
    fq4 = fused_gemm(x4.reshape(-1, x4.shape[-1]), kp['w4'], kp['s4'], kp['h4'],
                     relu=True).reshape(b, x4.shape[1], x4.shape[2], cp)

    # f5_proj: kernel-2/stride-2 deconv -> fused matmul + depth-to-space
    x5 = jnp.transpose(v5, (0, 2, 3, 1))
    _, h5, w5s, c5in = x5.shape
    y5 = fused_gemm(x5.reshape(b * h5 * w5s, c5in), kp['w5'], kp['s5'], kp['h5'], relu=True)
    fq5 = y5.reshape(b, h5, w5s, 2, 2, cp).transpose(0, 1, 3, 2, 4, 5).reshape(b, 2 * h5, 2 * w5s, cp)

    # CrossAttn gates (memory length 1 -> exact identity), one fused kernel
    gates = fused_gates(state, kp['wt'], kp['bt'], kp['wv'], kp['bv'], kp['wo'], kp['bo'])

    # gate-multiply + concat + aggr 1x1 conv + BN + ReLU, fused
    vcat = jnp.concatenate([fq3, fq4, fq5], axis=-1).reshape(b, ho * wo, 3 * cp)
    fq = gated_aggr(vcat, gates, kp['wa'], kp['sa'], kp['ha']).reshape(b, ho, wo, cp)

    # CoordConv (coords + 3x3 conv) then 3x3 conv; residual add fused into the last GEMM
    xs = jnp.linspace(-1.0, 1.0, wo)
    ys = jnp.linspace(-1.0, 1.0, ho)
    yy, xx = jnp.meshgrid(ys, xs, indexing='ij')
    coords = jnp.broadcast_to(jnp.stack([xx, yy], axis=-1), (b, ho, wo, 2)).astype(fq.dtype)
    cc_in = jnp.concatenate([fq[..., :c], coords], axis=-1)
    h1 = fused_gemm(_im2col3x3(cc_in), kp['wc1'], kp['sc1'], kp['hc1'], relu=True).reshape(b, ho, wo, cp)
    out = fused_gemm(_im2col3x3(h1[..., :c]), kp['wc2'], kp['sc2'], kp['hc2'],
                     relu=True, residual=fq.reshape(b * ho * wo, cp))
    out = out.reshape(b, ho, wo, cp)[..., :c]
    return jnp.transpose(out, (0, 3, 1, 2))                              # back to NCHW


# ----------------------------------------------------------------- pure-JAX reference
def _bn_ref(x, bn, eps=1e-5):
    inv = 1.0 / jnp.sqrt(bn['var'] + eps)
    return (x - bn['mean'][None, :, None, None]) * (bn['gamma'] * inv)[None, :, None, None] \
        + bn['beta'][None, :, None, None]


def _conv_ref(x, w, stride, pad):
    return lax.conv_general_dilated(x, w, (stride, stride), ((pad, pad), (pad, pad)),
                                    dimension_numbers=('NCHW', 'OIHW', 'NCHW'),
                                    precision=lax.Precision.HIGHEST)


def _mha_ref(tgt, mem, a, nhead):
    l, bsz, d = tgt.shape
    s = mem.shape[0]
    dh = d // nhead
    q = tgt @ a['wq'].T + a['bq']
    k = mem @ a['wk'].T + a['bk']
    v = mem @ a['wv'].T + a['bv']
    q = q.reshape(l, bsz, nhead, dh).transpose(1, 2, 0, 3)
    k = k.reshape(s, bsz, nhead, dh).transpose(1, 2, 0, 3)
    v = v.reshape(s, bsz, nhead, dh).transpose(1, 2, 0, 3)
    logits = jnp.einsum('bhld,bhsd->bhls', q, k, precision=lax.Precision.HIGHEST) / math.sqrt(dh)
    attn = jax.nn.softmax(logits, axis=-1)
    o = jnp.einsum('bhls,bhsd->bhld', attn, v, precision=lax.Precision.HIGHEST)
    o = o.transpose(2, 0, 1, 3).reshape(l, bsz, d)
    return o @ a['wo'].T + a['bo']


def neck_reference(p, v3, v4, v5, state, nhead):
    relu = jax.nn.relu
    f3 = relu(_bn_ref(_conv_ref(v3, p['w3'], 2, 0), p['bn3']))
    f4 = relu(_bn_ref(_conv_ref(v4, p['w4'], 1, 0), p['bn4']))
    b, _, h5, w5 = v5.shape
    cout = p['w5'].shape[1]
    y5 = jnp.einsum('bchw,cokl->bohkwl', v5, p['w5'],
                    precision=lax.Precision.HIGHEST).reshape(b, cout, 2 * h5, 2 * w5)
    f5 = relu(_bn_ref(y5, p['bn5']))
    txt = state[:, :, None].transpose(2, 0, 1)                  # [1, B, D]
    txt = txt @ p['wt'].T + p['bt']

    def seq(v):
        b_, c_, h_, w_ = v.shape
        return v.reshape(b_, c_, h_ * w_).transpose(2, 0, 1)

    b_, c_, h_, w_ = f3.shape
    fq3 = (seq(f3) * _mha_ref(seq(f3), txt, p['attn_f3'], nhead)).transpose(1, 2, 0).reshape(b_, c_, h_, w_)
    fq4 = (seq(f4) * _mha_ref(seq(f4), txt, p['attn_f4'], nhead)).transpose(1, 2, 0).reshape(b_, c_, h_, w_)
    fq5 = (seq(f5) * _mha_ref(seq(f5), txt, p['attn_f5'], nhead)).transpose(1, 2, 0).reshape(b_, c_, h_, w_)
    fq = jnp.concatenate([fq3, fq4, fq5], axis=1)
    fq = relu(_bn_ref(_conv_ref(fq, p['wa'], 1, 0), p['bna']))
    xs = jnp.linspace(-1.0, 1.0, w_)
    ys = jnp.linspace(-1.0, 1.0, h_)
    yy, xx = jnp.meshgrid(ys, xs, indexing='ij')
    coord = jnp.broadcast_to(jnp.stack([xx, yy], axis=0), (b_, 2, h_, w_))
    cc = jnp.concatenate([fq, coord], axis=1)
    fq1 = relu(_bn_ref(_conv_ref(cc, p['wc1'], 1, 1), p['bnc1']))
    fq1 = relu(_bn_ref(_conv_ref(fq1, p['wc2'], 1, 1), p['bnc2']))
    return fq1 + fq


# ------------------------------------------------------------------------------- main
if __name__ == "__main__":
    key = jax.random.PRNGKey(0)
    k3, k4, k5, ks, kparams = jax.random.split(key, 5)

    # Small shapes consistent with the module (channel widths scaled down from 512/1024):
    B = 2
    C3IN, C4IN, C5IN = 64, 128, 128      # in_channels
    C = 64                               # out_channels[1] == d_model
    D_TXT = 64                           # state feature dim
    NHEAD = 4
    H4 = W4 = 8                          # f4 spatial; f3 is 2x, f5 is 0.5x

    v3 = jax.random.normal(k3, (B, C3IN, 2 * H4, 2 * W4), jnp.float32)
    v4 = jax.random.normal(k4, (B, C4IN, H4, W4), jnp.float32)
    v5 = jax.random.normal(k5, (B, C5IN, H4 // 2, W4 // 2), jnp.float32)
    state = jax.random.normal(ks, (B, D_TXT), jnp.float32)

    params = init_neck_params(kparams, c3in=C3IN, c4in=C4IN, c5in=C5IN, c=C, d_txt=D_TXT)
    kparams_ready = prepare_kernel_params(params, c=C)

    out = neck_forward_pallas(kparams_ready, v3, v4, v5, state)
    out = jax.block_until_ready(out)

    ref = neck_reference(params, v3, v4, v5, state, NHEAD)
    assert out.shape == (B, C, H4, W4), out.shape
    assert jnp.allclose(out, ref, atol=1e-3, rtol=1e-3), \
        f"mismatch vs reference, max abs err {jnp.max(jnp.abs(out - ref))}"

    print("KERNEL_OK")
</pallas_src>

<mosaic_0001>
module attributes {stable_mosaic.version = 11 : i64} {
  func.func @_gemm_bn_act_kernel(%arg0: i32, %arg1: memref<128x256xf32, #tpu.memory_space<vmem>>, %arg2: memref<256x128xf32, #tpu.memory_space<vmem>>, %arg3: memref<1x128xf32, #tpu.memory_space<vmem>>, %arg4: memref<1x128xf32, #tpu.memory_space<vmem>>, %arg5: memref<128x128xf32, #tpu.memory_space<vmem>>) attributes {dimension_semantics = [#tpu.dimension_semantics<parallel>], iteration_bounds = array<i64: 1>, scalar_prefetch = 0 : i64, scratch_operands = 0 : i64, tpu.core_type = #tpu.core_type<tc>, window_params = [{transform_indices = @transform_0, window_bounds = array<i64: 128, 256>}, {pipeline_mode = #tpu.pipeline_mode<synchronous>, transform_indices = @transform_1, window_bounds = array<i64: 256, 128>}, {pipeline_mode = #tpu.pipeline_mode<synchronous>, transform_indices = @transform_2, window_bounds = array<i64: 1, 128>}, {pipeline_mode = #tpu.pipeline_mode<synchronous>, transform_indices = @transform_3, window_bounds = array<i64: 1, 128>}, {transform_indices = @transform_4, window_bounds = array<i64: 128, 128>}]} {
    %c0 = arith.constant 0 : index
    %c0_0 = arith.constant 0 : index
    %0 = vector.load %arg1[%c0, %c0_0] : memref<128x256xf32, #tpu.memory_space<vmem>>, vector<128x256xf32>
    %c0_1 = arith.constant 0 : index
    %c0_2 = arith.constant 0 : index
    %1 = vector.load %arg2[%c0_1, %c0_2] : memref<256x128xf32, #tpu.memory_space<vmem>>, vector<256x128xf32>
    %cst = arith.constant dense<0.000000e+00> : vector<128x128xf32>
    %2 = tpu.matmul %0, %1, %cst {dimension_numbers = #tpu.dot_dimension_numbers<[1], [0], [0], [1], [0, 0, 1, 1], [], []>, precision = #tpu.contract_precision<fp32>} : vector<128x256xf32>, vector<256x128xf32>, vector<128x128xf32> -> vector<128x128xf32>
    %c0_3 = arith.constant 0 : index
    %c0_4 = arith.constant 0 : index
    %3 = vector.load %arg3[%c0_3, %c0_4] : memref<1x128xf32, #tpu.memory_space<vmem>>, vector<1x128xf32>
    %4 = vector.broadcast %3 : vector<1x128xf32> to vector<128x128xf32>
    %5 = arith.mulf %2, %4 : vector<128x128xf32>
    %c0_5 = arith.constant 0 : index
    %c0_6 = arith.constant 0 : index
    %6 = vector.load %arg4[%c0_5, %c0_6] : memref<1x128xf32, #tpu.memory_space<vmem>>, vector<1x128xf32>
    %7 = vector.broadcast %6 : vector<1x128xf32> to vector<128x128xf32>
    %8 = arith.addf %5, %7 : vector<128x128xf32>
    %cst_7 = arith.constant 0.000000e+00 : f32
    %9 = vector.broadcast %cst_7 : f32 to vector<128x128xf32>
    %10 = arith.maximumf %8, %9 : vector<128x128xf32>
    %c0_8 = arith.constant 0 : index
    %c0_9 = arith.constant 0 : index
    %11 = vector.load %arg5[%c0_8, %c0_9] : memref<128x128xf32, #tpu.memory_space<vmem>>, vector<128x128xf32>
    tpu.vector_store %arg5[%c0_8, %c0_9], %10 {strides = array<i32>} : memref<128x128xf32, #tpu.memory_space<vmem>>, vector<128x128xf32>,
    return
  }
  func.func @transform_0(%arg0: i32) -> (i32, i32) {
    %c0_i32 = arith.constant 0 : i32
    %c0_i32_0 = arith.constant 0 : i32
    return %arg0, %c0_i32 : i32, i32
  }
  func.func @transform_1(%arg0: i32) -> (i32, i32) {
    %c0_i32 = arith.constant 0 : i32
    %c0_i32_0 = arith.constant 0 : i32
    %c0_i32_1 = arith.constant 0 : i32
    return %c0_i32, %c0_i32_0 : i32, i32
  }
  func.func @transform_2(%arg0: i32) -> (i32, i32) {
    %c0_i32 = arith.constant 0 : i32
    %c0_i32_0 = arith.constant 0 : i32
    %c0_i32_1 = arith.constant 0 : i32
    return %c0_i32, %c0_i32_0 : i32, i32
  }
  func.func @transform_3(%arg0: i32) -> (i32, i32) {
    %c0_i32 = arith.constant 0 : i32
    %c0_i32_0 = arith.constant 0 : i32
    %c0_i32_1 = arith.constant 0 : i32
    return %c0_i32, %c0_i32_0 : i32, i32
  }
  func.func @transform_4(%arg0: i32) -> (i32, i32) {
    %c0_i32 = arith.constant 0 : i32
    %c0_i32_0 = arith.constant 0 : i32
    return %arg0, %c0_i32 : i32, i32
  }
}

</mosaic_0001>

<llo_original>
// kernel: tpu_custom_call.1
$region0: #{tpu_custom_call.1}
  #allocation0 [shape = 'u32[]', space=smem, size = 0x4, offset = 0x4, fixed_abs, tag = 'smem constant byte address 0x4 - core index']
  #allocation1 [shape = 'u32[72,128]{1,0:T(1,128)}', space=vmem, size = 0x9000, scoped, tag = 'internal scratch']
  %s0 = inlined_call_operand.hbm [shape: f32[128,256], index: 0, kind: input, shape index: {}]
  %s1 = inlined_call_operand.hbm [shape: f32[256,128], index: 1, kind: input, shape index: {}]
  %s2 = inlined_call_operand.vmem [shape: f32[1,128], index: 2, kind: input, shape index: {}]
  %s3 = inlined_call_operand.vmem [shape: f32[1,128], index: 3, kind: input, shape index: {}]
  %s4 = inlined_call_operand.hbm [shape: f32[128,128], index: 4, kind: output, shape index: {}]
  %s5 = sld [smem:[#allocation0]]
  $region34: #{tpu_custom_call.1} parent=0
    _
  %s7 = ssub.s32 1, %s5
  %s8 = scalar_select 0, %s7, %s5
  $region1: #{tpu_custom_call.1} parent=0
    #allocation2 [shape = 'u8[131072]{0}', space=vmem, size = 0x20000, scoped, tag = 'input window, operand 0, single buffered']
    #allocation3 [shape = 's32[1]{0}', space=sflag, size = 0x4, scoped, tag = 'scoped memory for tpu_custom_call.1']
    #allocation4 [shape = 's32[1]{0}', space=sflag, size = 0x4, scoped, tag = 'scoped memory for tpu_custom_call.1']
    #allocation5 [shape = 'u8[131072]{0}', space=vmem, size = 0x20000, scoped, tag = 'input window, operand 1, single buffered']
    #allocation6 [shape = 's32[1]{0}', space=sflag, size = 0x4, scoped, tag = 'scoped memory for tpu_custom_call.1']
    #allocation7 [shape = 'u8[65536]{0}', space=vmem, size = 0x10000, scoped, tag = 'output window, operand 0, single buffered']
    %9 = vsyncpa [#allocation3], 0
    %10 = vsyncpa [#allocation6], 0
    %11 = vsyncpa [#allocation4], 0
    // Predicated region
    $region2: #{tpu_custom_call.1} parent=1 // pred_check
      _
    $region3: #{tpu_custom_call.1} parent=1 // pred_check_branch
      %13 = sbr.rel (0) target = $region5
    $region4: #{tpu_custom_call.1} parent=1 // pred_region
      %15 = vsyncadd [#allocation3], 0
      %s16 = sshll.u32 %s0, 4
      %s17 = int_to_ptr.hbm [resolvable:$true] %s16
      %s18 = sshll.u32 [#allocation2], 4
      %s19 = int_to_ptr.vmem [resolvable:$true] %s18
      %24 = dma.hbm_to_vmem [thread:$0]  %s17, 4096, %s19, [#allocation3], 256, 256, 16
    $region5: #{tpu_custom_call.1} parent=1 // pred_fallthru
      _
    // Predicated region
    $region6: #{tpu_custom_call.1} parent=1 // pred_check
      _
    $region7: #{tpu_custom_call.1} parent=1 // pred_check_branch
      %26 = sbr.rel (0) target = $region9
    $region8: #{tpu_custom_call.1} parent=1 // pred_region
      %28 = vsyncadd [#allocation6], 0
      %s29 = sshll.u32 %s1, 4
      %s30 = int_to_ptr.hbm [resolvable:$true] %s29
      %s31 = sshll.u32 [#allocation5], 4
      %s32 = int_to_ptr.vmem [resolvable:$true] %s31
      %37 = dma.hbm_to_vmem [thread:$0]  %s30, 4096, %s32, [#allocation6], 128, 128, 8
    $region9: #{tpu_custom_call.1} parent=1 // pred_fallthru
      _
    // Predicated region
    $region10: #{tpu_custom_call.1} parent=1 // pred_check
      _
    $region11: #{tpu_custom_call.1} parent=1 // pred_check_branch
      %39 = sbr.rel (0) target = $region13
    $region12: #{tpu_custom_call.1} parent=1 // pred_region
      _
    $region13: #{tpu_custom_call.1} parent=1 // pred_fallthru
      _
    // Predicated region
    $region14: #{tpu_custom_call.1} parent=1 // pred_check
      _
    $region15: #{tpu_custom_call.1} parent=1 // pred_check_branch
      %41 = sbr.rel (0) target = $region17
    $region16: #{tpu_custom_call.1} parent=1 // pred_region
      _
    $region17: #{tpu_custom_call.1} parent=1 // pred_fallthru
      _
    // Predicated region
    $region18: #{tpu_custom_call.1} parent=1 // pred_check
      _
    $region19: #{tpu_custom_call.1} parent=1 // pred_check_branch
      %43 = sbr.rel (0) target = $region21
    $region20: #{tpu_custom_call.1} parent=1 // pred_region
      %45 = dma.done [#allocation3], 4096
    $region21: #{tpu_custom_call.1} parent=1 // pred_fallthru
      _
    // Predicated region
    $region22: #{tpu_custom_call.1} parent=1 // pred_check
      _
    $region23: #{tpu_custom_call.1} parent=1 // pred_check_branch
      %47 = sbr.rel (0) target = $region25
    $region24: #{tpu_custom_call.1} parent=1 // pred_region
      %49 = dma.done [#allocation6], 4096
    $region25: #{tpu_custom_call.1} parent=1 // pred_fallthru
      _
    %v50 = vld [vmem:[#allocation2] sm:$0xff]
    %v51 = vld [vmem:[#allocation2 + $0x8] sm:$0xff]
    %v52 = vld [vmem:[#allocation2 + $0x10] sm:$0xff]
    %v53 = vld [vmem:[#allocation2 + $0x18] sm:$0xff]
    %v54 = vld [vmem:[#allocation2 + $0x20] sm:$0xff]
    %v55 = vld [vmem:[#allocation2 + $0x28] sm:$0xff]
    %v56 = vld [vmem:[#allocation2 + $0x30] sm:$0xff]
    %v57 = vld [vmem:[#allocation2 + $0x38] sm:$0xff]
    %v58 = vld [vmem:[#allocation2 + $0x40] sm:$0xff]
    %v59 = vld [vmem:[#allocation2 + $0x48] sm:$0xff]
    %v60 = vld [vmem:[#allocation2 + $0x50] sm:$0xff]
    %v61 = vld [vmem:[#allocation2 + $0x58] sm:$0xff]
    %v62 = vld [vmem:[#allocation2 + $0x60] sm:$0xff]
    %v63 = vld [vmem:[#allocation2 + $0x68] sm:$0xff]
    %v64 = vld [vmem:[#allocation2 + $0x70] sm:$0xff]
    %v65 = vld [vmem:[#allocation2 + $0x78] sm:$0xff]
    %v66 = vld [vmem:[#allocation2 + $0x80] sm:$0xff]
    %v67 = vld [vmem:[#allocation2 + $0x88] sm:$0xff]
    %v68 = vld [vmem:[#allocation2 + $0x90] sm:$0xff]
    %v69 = vld [vmem:[#allocation2 + $0x98] sm:$0xff]
    %v70 = vld [vmem:[#allocation2 + $0xa0] sm:$0xff]
    %v71 = vld [vmem:[#allocation2 + $0xa8] sm:$0xff]
    %v72 = vld [vmem:[#allocation2 + $0xb0] sm:$0xff]
    %v73 = vld [vmem:[#allocation2 + $0xb8] sm:$0xff]
    %v74 = vld [vmem:[#allocation2 + $0xc0] sm:$0xff]
    %v75 = vld [vmem:[#allocation2 + $0xc8] sm:$0xff]
    %v76 = vld [vmem:[#allocation2 + $0xd0] sm:$0xff]
    %v77 = vld [vmem:[#allocation2 + $0xd8] sm:$0xff]
    %v78 = vld [vmem:[#allocation2 + $0xe0] sm:$0xff]
    %v79 = vld [vmem:[#allocation2 + $0xe8] sm:$0xff]
    %v80 = vld [vmem:[#allocation2 + $0xf0] sm:$0xff]
    %v81 = vld [vmem:[#allocation2 + $0xf8] sm:$0xff]
    %v82 = vld [vmem:[#allocation5] sm:$0xff]
    %v83 = vld [vmem:[#allocation5 + $0x8] sm:$0xff]
    %v84 = vld [vmem:[#allocation5 + $0x10] sm:$0xff]
    %v85 = vld [vmem:[#allocation5 + $0x18] sm:$0xff]
    %v86 = vld [vmem:[#allocation5 + $0x20] sm:$0xff]
    %v87 = vld [vmem:[#allocation5 + $0x28] sm:$0xff]
    %v88 = vld [vmem:[#allocation5 + $0x30] sm:$0xff]
    %v89 = vld [vmem:[#allocation5 + $0x38] sm:$0xff]
    %v90 = vld [vmem:[#allocation5 + $0x40] sm:$0xff]
    %v91 = vld [vmem:[#allocation5 + $0x48] sm:$0xff]
    %v92 = vld [vmem:[#allocation5 + $0x50] sm:$0xff]
    %v93 = vld [vmem:[#allocation5 + $0x58] sm:$0xff]
    %v94 = vld [vmem:[#allocation5 + $0x60] sm:$0xff]
    %v95 = vld [vmem:[#allocation5 + $0x68] sm:$0xff]
    %v96 = vld [vmem:[#allocation5 + $0x70] sm:$0xff]
    %v97 = vld [vmem:[#allocation5 + $0x78] sm:$0xff]
    %v98 = vld [vmem:[#allocation5 + $0x80] sm:$0xff]
    %v99 = vld [vmem:[#allocation5 + $0x88] sm:$0xff]
    %v100 = vld [vmem:[#allocation5 + $0x90] sm:$0xff]
    %v101 = vld [vmem:[#allocation5 + $0x98] sm:$0xff]
    %v102 = vld [vmem:[#allocation5 + $0xa0] sm:$0xff]
    %v103 = vld [vmem:[#allocation5 + $0xa8] sm:$0xff]
    %v104 = vld [vmem:[#allocation5 + $0xb0] sm:$0xff]
    %v105 = vld [vmem:[#allocation5 + $0xb8] sm:$0xff]
    %v106 = vld [vmem:[#allocation5 + $0xc0] sm:$0xff]
    %v107 = vld [vmem:[#allocation5 + $0xc8] sm:$0xff]
    %v108 = vld [vmem:[#allocation5 + $0xd0] sm:$0xff]
    %v109 = vld [vmem:[#allocation5 + $0xd8] sm:$0xff]
    %v110 = vld [vmem:[#allocation5 + $0xe0] sm:$0xff]
    %v111 = vld [vmem:[#allocation5 + $0xe8] sm:$0xff]
    %v112 = vld [vmem:[#allocation5 + $0xf0] sm:$0xff]
    %v113 = vld [vmem:[#allocation5 + $0xf8] sm:$0xff]
    %v114 = vand.u32 %v97, 4294901760
    %115 = vmatpush.msra.mxu0 %v114
    %v116 = vand.u32 %v96, 4294901760
    %117 = vmatpush.msra.mxu0 %v116
    %v118 = vand.u32 %v95, 4294901760
    %119 = vmatpush.msra.mxu0 %v118
    %v120 = vand.u32 %v94, 4294901760
    %121 = vmatpush.msra.mxu0 %v120
    %v122 = vand.u32 %v93, 4294901760
    %123 = vmatpush.msra.mxu0 %v122
    %v124 = vand.u32 %v92, 4294901760
    %125 = vmatpush.msra.mxu0 %v124
    %v126 = vand.u32 %v91, 4294901760
    %127 = vmatpush.msra.mxu0 %v126
    %v128 = vand.u32 %v90, 4294901760
    %129 = vmatpush.msra.mxu0 %v128
    %v130 = vand.u32 %v89, 4294901760
    %131 = vmatpush.msra.mxu0 %v130
    %v132 = vand.u32 %v88, 4294901760
    %133 = vmatpush.msra.mxu0 %v132
    %v134 = vand.u32 %v87, 4294901760
    %135 = vmatpush.msra.mxu0 %v134
    %v136 = vand.u32 %v86, 4294901760
    %137 = vmatpush.msra.mxu0 %v136
    %v138 = vand.u32 %v85, 4294901760
    %139 = vmatpush.msra.mxu0 %v138
    %v140 = vand.u32 %v84, 4294901760
    %141 = vmatpush.msra.mxu0 %v140
    %v142 = vand.u32 %v83, 4294901760
    %143 = vmatpush.msra.mxu0 %v142
    %v144 = vand.u32 %v82, 4294901760
    %145 = vmatpush.msra.mxu0 %v144
    %v146 = vand.u32 %v50, 4294901760
    %v147 = vsub.f32 %v50, %v146
    %v148 = vand.u32 %v147, 4294901760
    %v149 = vsub.f32 %v147, %v148
    %v150 = vand.u32 %v149, 4294901760
    %151 = vmatmul.f32.gmra.mxu0 %v150
    %v152 = vpop.f32.mrf.mxu0
    %v153 = vadd.f32 0.0, %v152
    %v154 = vand.u32 %v52, 4294901760
    %v155 = vsub.f32 %v52, %v154
    %v156 = vand.u32 %v155, 4294901760
    %v157 = vsub.f32 %v155, %v156
    %v158 = vand.u32 %v157, 4294901760
    %159 = vmatmul.f32.gmra.mxu0 %v158
    %v160 = vpop.f32.mrf.mxu0
    %v161 = vadd.f32 0.0, %v160
    %v162 = vand.u32 %v54, 4294901760
    %v163 = vsub.f32 %v54, %v162
    %v164 = vand.u32 %v163, 4294901760
    %v165 = vsub.f32 %v163, %v164
    %v166 = vand.u32 %v165, 4294901760
    %167 = vmatmul.f32.gmra.mxu0 %v166
    %v168 = vpop.f32.mrf.mxu0
    %v169 = vadd.f32 0.0, %v168
    %v170 = vand.u32 %v56, 4294901760
    %v171 = vsub.f32 %v56, %v170
    %v172 = vand.u32 %v171, 4294901760
    %v173 = vsub.f32 %v171, %v172
    %v174 = vand.u32 %v173, 4294901760
    %175 = vmatmul.f32.gmra.mxu0 %v174
    %v176 = vpop.f32.mrf.mxu0
    %v177 = vadd.f32 0.0, %v176
    %v178 = vand.u32 %v58, 4294901760
    %v179 = vsub.f32 %v58, %v178
    %v180 = vand.u32 %v179, 4294901760
    %v181 = vsub.f32 %v179, %v180
    %v182 = vand.u32 %v181, 4294901760
    %183 = vmatmul.f32.gmra.mxu0 %v182
    %v184 = vpop.f32.mrf.mxu0
    %v185 = vadd.f32 0.0, %v184
    %v186 = vand.u32 %v60, 4294901760
    %v187 = vsub.f32 %v60, %v186
    %v188 = vand.u32 %v187, 4294901760
    %v189 = vsub.f32 %v187, %v188
    %v190 = vand.u32 %v189, 4294901760
    %191 = vmatmul.f32.gmra.mxu0 %v190
    %v192 = vpop.f32.mrf.mxu0
    %v193 = vadd.f32 0.0, %v192
    %v194 = vand.u32 %v62, 4294901760
    %v195 = vsub.f32 %v62, %v194
    %v196 = vand.u32 %v195, 4294901760
    %v197 = vsub.f32 %v195, %v196
    %v198 = vand.u32 %v197, 4294901760
    %199 = vmatmul.f32.gmra.mxu0 %v198
    %v200 = vpop.f32.mrf.mxu0
    %v201 = vadd.f32 0.0, %v200
    %v202 = vand.u32 %v64, 4294901760
    %v203 = vsub.f32 %v64, %v202
    %v204 = vand.u32 %v203, 4294901760
    %v205 = vsub.f32 %v203, %v204
    %v206 = vand.u32 %v205, 4294901760
    %207 = vmatmul.f32.gmra.mxu0 %v206
    %v208 = vpop.f32.mrf.mxu0
    %v209 = vadd.f32 0.0, %v208
    %v210 = vand.u32 %v66, 4294901760
    %v211 = vsub.f32 %v66, %v210
    %v212 = vand.u32 %v211, 4294901760
    %v213 = vsub.f32 %v211, %v212
    %v214 = vand.u32 %v213, 4294901760
    %215 = vmatmul.f32.gmra.mxu0 %v214
    %v216 = vpop.f32.mrf.mxu0
    %v217 = vadd.f32 0.0, %v216
    %v218 = vand.u32 %v68, 4294901760
    %v219 = vsub.f32 %v68, %v218
    %v220 = vand.u32 %v219, 4294901760
    %v221 = vsub.f32 %v219, %v220
    %v222 = vand.u32 %v221, 4294901760
    %223 = vmatmul.f32.gmra.mxu0 %v222
    %v224 = vpop.f32.mrf.mxu0
    %v225 = vadd.f32 0.0, %v224
    %v226 = vand.u32 %v70, 4294901760
    %v227 = vsub.f32 %v70, %v226
    %v228 = vand.u32 %v227, 4294901760
    %v229 = vsub.f32 %v227, %v228
    %v230 = vand.u32 %v229, 4294901760
    %231 = vmatmul.f32.gmra.mxu0 %v230
    %v232 = vpop.f32.mrf.mxu0
    %v233 = vadd.f32 0.0, %v232
    %v234 = vand.u32 %v72, 4294901760
    %v235 = vsub.f32 %v72, %v234
    %v236 = vand.u32 %v235, 4294901760
    %v237 = vsub.f32 %v235, %v236
    %v238 = vand.u32 %v237, 4294901760
    %239 = vmatmul.f32.gmra.mxu0 %v238
    %v240 = vpop.f32.mrf.mxu0
    %v241 = vadd.f32 0.0, %v240
    %v242 = vand.u32 %v74, 4294901760
    %v243 = vsub.f32 %v74, %v242
    %v244 = vand.u32 %v243, 4294901760
    %v245 = vsub.f32 %v243, %v244
    %v246 = vand.u32 %v245, 4294901760
    %247 = vmatmul.f32.gmra.mxu0 %v246
    %v248 = vpop.f32.mrf.mxu0
    %v249 = vadd.f32 0.0, %v248
    %v250 = vand.u32 %v76, 4294901760
    %v251 = vsub.f32 %v76, %v250
    %v252 = vand.u32 %v251, 4294901760
    %v253 = vsub.f32 %v251, %v252
    %v254 = vand.u32 %v253, 4294901760
    %255 = vmatmul.f32.gmra.mxu0 %v254
    %v256 = vpop.f32.mrf.mxu0
    %v257 = vadd.f32 0.0, %v256
    %v258 = vand.u32 %v78, 4294901760
    %v259 = vsub.f32 %v78, %v258
    %v260 = vand.u32 %v259, 4294901760
    %v261 = vsub.f32 %v259, %v260
    %v262 = vand.u32 %v261, 4294901760
    %263 = vmatmul.f32.gmra.mxu0 %v262
    %v264 = vpop.f32.mrf.mxu0
    %v265 = vadd.f32 0.0, %v264
    %v266 = vand.u32 %v80, 4294901760
    %v267 = vsub.f32 %v80, %v266
    %v268 = vand.u32 %v267, 4294901760
    %v269 = vsub.f32 %v267, %v268
    %v270 = vand.u32 %v269, 4294901760
    %271 = vmatmul.f32.gmra.mxu0 %v270
    %v272 = vpop.f32.mrf.mxu0
    %v273 = vadd.f32 0.0, %v272
    %274 = vdwg.mxu0
    %v275 = vand.u32 %v97, 4294901760
    %v276 = vsub.f32 %v97, %v275
    %v277 = vand.u32 %v276, 4294901760
    %v278 = vsub.f32 %v276, %v277
    %v279 = vand.u32 %v278, 4294901760
    %280 = vmatpush.msra.mxu0 %v279
    %v281 = vand.u32 %v96, 4294901760
    %v282 = vsub.f32 %v96, %v281
    %v283 = vand.u32 %v282, 4294901760
    %v284 = vsub.f32 %v282, %v283
    %v285 = vand.u32 %v284, 4294901760
    %286 = vmatpush.msra.mxu0 %v285
    %v287 = vand.u32 %v95, 4294901760
    %v288 = vsub.f32 %v95, %v287
    %v289 = vand.u32 %v288, 4294901760
    %v290 = vsub.f32 %v288, %v289
    %v291 = vand.u32 %v290, 4294901760
    %292 = vmatpush.msra.mxu0 %v291
    %v293 = vand.u32 %v94, 4294901760
    %v294 = vsub.f32 %v94, %v293
    %v295 = vand.u32 %v294, 4294901760
    %v296 = vsub.f32 %v294, %v295
    %v297 = vand.u32 %v296, 4294901760
    %298 = vmatpush.msra.mxu0 %v297
    %v299 = vand.u32 %v93, 4294901760
    %v300 = vsub.f32 %v93, %v299
    %v301 = vand.u32 %v300, 4294901760
    %v302 = vsub.f32 %v300, %v301
    %v303 = vand.u32 %v302, 4294901760
    %304 = vmatpush.msra.mxu0 %v303
    %v305 = vand.u32 %v92, 4294901760
    %v306 = vsub.f32 %v92, %v305
    %v307 = vand.u32 %v306, 4294901760
    %v308 = vsub.f32 %v306, %v307
    %v309 = vand.u32 %v308, 4294901760
    %310 = vmatpush.msra.mxu0 %v309
    %v311 = vand.u32 %v91, 4294901760
    %v312 = vsub.f32 %v91, %v311
    %v313 = vand.u32 %v312, 4294901760
    %v314 = vsub.f32 %v312, %v313
    %v315 = vand.u32 %v314, 4294901760
    %316 = vmatpush.msra.mxu0 %v315
    %v317 = vand.u32 %v90, 4294901760
    %v318 = vsub.f32 %v90, %v317
    %v319 = vand.u32 %v318, 4294901760
    %v320 = vsub.f32 %v318, %v319
    %v321 = vand.u32 %v320, 4294901760
    %322 = vmatpush.msra.mxu0 %v321
    %v323 = vand.u32 %v89, 4294901760
    %v324 = vsub.f32 %v89, %v323
    %v325 = vand.u32 %v324, 4294901760
    %v326 = vsub.f32 %v324, %v325
    %v327 = vand.u32 %v326, 4294901760
    %328 = vmatpush.msra.mxu0 %v327
    %v329 = vand.u32 %v88, 4294901760
    %v330 = vsub.f32 %v88, %v329
    %v331 = vand.u32 %v330, 4294901760
    %v332 = vsub.f32 %v330, %v331
    %v333 = vand.u32 %v332, 4294901760
    %334 = vmatpush.msra.mxu0 %v333
    %v335 = vand.u32 %v87, 4294901760
    %v336 = vsub.f32 %v87, %v335
    %v337 = vand.u32 %v336, 4294901760
    %v338 = vsub.f32 %v336, %v337
    %v339 = vand.u32 %v338, 4294901760
    %340 = vmatpush.msra.mxu0 %v339
    %v341 = vand.u32 %v86, 4294901760
    %v342 = vsub.f32 %v86, %v341
    %v343 = vand.u32 %v342, 4294901760
    %v344 = vsub.f32 %v342, %v343
    %v345 = vand.u32 %v344, 4294901760
    %346 = vmatpush.msra.mxu0 %v345
    %v347 = vand.u32 %v85, 4294901760
    %v348 = vsub.f32 %v85, %v347
    %v349 = vand.u32 %v348, 4294901760
    %v350 = vsub.f32 %v348, %v349
    %v351 = vand.u32 %v350, 4294901760
    %352 = vmatpush.msra.mxu0 %v351
    %v353 = vand.u32 %v84, 4294901760
    %v354 = vsub.f32 %v84, %v353
    %v355 = vand.u32 %v354, 4294901760
    %v356 = vsub.f32 %v354, %v355
    %v357 = vand.u32 %v356, 4294901760
    %358 = vmatpush.msra.mxu0 %v357
    %v359 = vand.u32 %v83, 4294901760
    %v360 = vsub.f32 %v83, %v359
    %v361 = vand.u32 %v360, 4294901760
    %v362 = vsub.f32 %v360, %v361
    %v363 = vand.u32 %v362, 4294901760
    %364 = vmatpush.msra.mxu0 %v363
    %v365 = vand.u32 %v82, 4294901760
    %v366 = vsub.f32 %v82, %v365
    %v367 = vand.u32 %v366, 4294901760
    %v368 = vsub.f32 %v366, %v367
    %v369 = vand.u32 %v368, 4294901760
    %370 = vmatpush.msra.mxu0 %v369
    %v371 = vand.u32 %v50, 4294901760
    %372 = vmatmul.f32.gmra.mxu0 %v371
    %v373 = vpop.f32.mrf.mxu0
    %v374 = vadd.f32 %v153, %v373
    %v375 = vand.u32 %v52, 4294901760
    %376 = vmatmul.f32.gmra.mxu0 %v375
    %v377 = vpop.f32.mrf.mxu0
    %v378 = vadd.f32 %v161, %v377
    %v379 = vand.u32 %v54, 4294901760
    %380 = vmatmul.f32.gmra.mxu0 %v379
    %v381 = vpop.f32.mrf.mxu0
    %v382 = vadd.f32 %v169, %v381
    %v383 = vand.u32 %v56, 4294901760
    %384 = vmatmul.f32.gmra.mxu0 %v383
    %v385 = vpop.f32.mrf.mxu0
    %v386 = vadd.f32 %v177, %v385
    %v387 = vand.u32 %v58, 4294901760
    %388 = vmatmul.f32.gmra.mxu0 %v387
    %v389 = vpop.f32.mrf.mxu0
    %v390 = vadd.f32 %v185, %v389
    %v391 = vand.u32 %v60, 4294901760
    %392 = vmatmul.f32.gmra.mxu0 %v391
    %v393 = vpop.f32.mrf.mxu0
    %v394 = vadd.f32 %v193, %v393
    %v395 = vand.u32 %v62, 4294901760
    %396 = vmatmul.f32.gmra.mxu0 %v395
    %v397 = vpop.f32.mrf.mxu0
    %v398 = vadd.f32 %v201, %v397
    %v399 = vand.u32 %v64, 4294901760
    %400 = vmatmul.f32.gmra.mxu0 %v399
    %v401 = vpop.f32.mrf.mxu0
    %v402 = vadd.f32 %v209, %v401
    %v403 = vand.u32 %v66, 4294901760
    %404 = vmatmul.f32.gmra.mxu0 %v403
    %v405 = vpop.f32.mrf.mxu0
    %v406 = vadd.f32 %v217, %v405
    %v407 = vand.u32 %v68, 4294901760
    %408 = vmatmul.f32.gmra.mxu0 %v407
    %v409 = vpop.f32.mrf.mxu0
    %v410 = vadd.f32 %v225, %v409
    %v411 = vand.u32 %v70, 4294901760
    %412 = vmatmul.f32.gmra.mxu0 %v411
    %v413 = vpop.f32.mrf.mxu0
    %v414 = vadd.f32 %v233, %v413
    %v415 = vand.u32 %v72, 4294901760
    %416 = vmatmul.f32.gmra.mxu0 %v415
    %v417 = vpop.f32.mrf.mxu0
    %v418 = vadd.f32 %v241, %v417
    %v419 = vand.u32 %v74, 4294901760
    %420 = vmatmul.f32.gmra.mxu0 %v419
    %v421 = vpop.f32.mrf.mxu0
    %v422 = vadd.f32 %v249, %v421
    %v423 = vand.u32 %v76, 4294901760
    %424 = vmatmul.f32.gmra.mxu0 %v423
    %v425 = vpop.f32.mrf.mxu0
    %v426 = vadd.f32 %v257, %v425
    %v427 = vand.u32 %v78, 4294901760
    %428 = vmatmul.f32.gmra.mxu0 %v427
    %v429 = vpop.f32.mrf.mxu0
    %v430 = vadd.f32 %v265, %v429
    %v431 = vand.u32 %v80, 4294901760
    %432 = vmatmul.f32.gmra.mxu0 %v431
    %v433 = vpop.f32.mrf.mxu0
    %v434 = vadd.f32 %v273, %v433
    %435 = vdwg.mxu0
    %v436 = vand.u32 %v97, 4294901760
    %v437 = vsub.f32 %v97, %v436
    %438 = vmatpush.msra.mxu0 %v437
    %v439 = vand.u32 %v96, 4294901760
    %v440 = vsub.f32 %v96, %v439
    %441 = vmatpush.msra.mxu0 %v440
    %v442 = vand.u32 %v95, 4294901760
    %v443 = vsub.f32 %v95, %v442
    %444 = vmatpush.msra.mxu0 %v443
    %v445 = vand.u32 %v94, 4294901760
    %v446 = vsub.f32 %v94, %v445
    %447 = vmatpush.msra.mxu0 %v446
    %v448 = vand.u32 %v93, 4294901760
    %v449 = vsub.f32 %v93, %v448
    %450 = vmatpush.msra.mxu0 %v449
    %v451 = vand.u32 %v92, 4294901760
    %v452 = vsub.f32 %v92, %v451
    %453 = vmatpush.msra.mxu0 %v452
    %v454 = vand.u32 %v91, 4294901760
    %v455 = vsub.f32 %v91, %v454
    %456 = vmatpush.msra.mxu0 %v455
    %v457 = vand.u32 %v90, 4294901760
    %v458 = vsub.f32 %v90, %v457
    %459 = vmatpush.msra.mxu0 %v458
    %v460 = vand.u32 %v89, 4294901760
    %v461 = vsub.f32 %v89, %v460
    %462 = vmatpush.msra.mxu0 %v461
    %v463 = vand.u32 %v88, 4294901760
    %v464 = vsub.f32 %v88, %v463
    %465 = vmatpush.msra.mxu0 %v464
    %v466 = vand.u32 %v87, 4294901760
    %v467 = vsub.f32 %v87, %v466
    %468 = vmatpush.msra.mxu0 %v467
    %v469 = vand.u32 %v86, 4294901760
    %v470 = vsub.f32 %v86, %v469
    %471 = vmatpush.msra.mxu0 %v470
    %v472 = vand.u32 %v85, 4294901760
    %v473 = vsub.f32 %v85, %v472
    %474 = vmatpush.msra.mxu0 %v473
    %v475 = vand.u32 %v84, 4294901760
    %v476 = vsub.f32 %v84, %v475
    %477 = vmatpush.msra.mxu0 %v476
    %v478 = vand.u32 %v83, 4294901760
    %v479 = vsub.f32 %v83, %v478
    %480 = vmatpush.msra.mxu0 %v479
    %v481 = vand.u32 %v82, 4294901760
    %v482 = vsub.f32 %v82, %v481
    %483 = vmatpush.msra.mxu0 %v482
    %v484 = vand.u32 %v50, 4294901760
    %v485 = vsub.f32 %v50, %v484
    %486 = vmatmul.f32.gmra.mxu0 %v485
    %v487 = vpop.f32.mrf.mxu0
    %v488 = vadd.f32 %v374, %v487
    %v489 = vand.u32 %v52, 4294901760
    %v490 = vsub.f32 %v52, %v489
    %491 = vmatmul.f32.gmra.mxu0 %v490
    %v492 = vpop.f32.mrf.mxu0
    %v493 = vadd.f32 %v378, %v492
    %v494 = vand.u32 %v54, 4294901760
    %v495 = vsub.f32 %v54, %v494
    %496 = vmatmul.f32.gmra.mxu0 %v495
    %v497 = vpop.f32.mrf.mxu0
    %v498 = vadd.f32 %v382, %v497
    %v499 = vand.u32 %v56, 4294901760
    %v500 = vsub.f32 %v56, %v499
    %501 = vmatmul.f32.gmra.mxu0 %v500
    %v502 = vpop.f32.mrf.mxu0
    %v503 = vadd.f32 %v386, %v502
    %v504 = vand.u32 %v58, 4294901760
    %v505 = vsub.f32 %v58, %v504
    %506 = vmatmul.f32.gmra.mxu0 %v505
    %v507 = vpop.f32.mrf.mxu0
    %v508 = vadd.f32 %v390, %v507
    %v509 = vand.u32 %v60, 4294901760
    %v510 = vsub.f32 %v60, %v509
    %511 = vmatmul.f32.gmra.mxu0 %v510
    %v512 = vpop.f32.mrf.mxu0
    %v513 = vadd.f32 %v394, %v512
    %v514 = vand.u32 %v62, 4294901760
    %v515 = vsub.f32 %v62, %v514
    %516 = vmatmul.f32.gmra.mxu0 %v515
    %v517 = vpop.f32.mrf.mxu0
    %v518 = vadd.f32 %v398, %v517
    %v519 = vand.u32 %v64, 4294901760
    %v520 = vsub.f32 %v64, %v519
    %521 = vmatmul.f32.gmra.mxu0 %v520
    %v522 = vpop.f32.mrf.mxu0
    %v523 = vadd.f32 %v402, %v522
    %v524 = vand.u32 %v66, 4294901760
    %v525 = vsub.f32 %v66, %v524
    %526 = vmatmul.f32.gmra.mxu0 %v525
    %v527 = vpop.f32.mrf.mxu0
    %v528 = vadd.f32 %v406, %v527
    %v529 = vand.u32 %v68, 4294901760
    %v530 = vsub.f32 %v68, %v529
    %531 = vmatmul.f32.gmra.mxu0 %v530
    %v532 = vpop.f32.mrf.mxu0
    %v533 = vadd.f32 %v410, %v532
    %v534 = vand.u32 %v70, 4294901760
    %v535 = vsub.f32 %v70, %v534
    %536 = vmatmul.f32.gmra.mxu0 %v535
    %v537 = vpop.f32.mrf.mxu0
    %v538 = vadd.f32 %v414, %v537
    %v539 = vand.u32 %v72, 4294901760
    %v540 = vsub.f32 %v72, %v539
    %541 = vmatmul.f32.gmra.mxu0 %v540
    %v542 = vpop.f32.mrf.mxu0
    %v543 = vadd.f32 %v418, %v542
    %v544 = vand.u32 %v74, 4294901760
    %v545 = vsub.f32 %v74, %v544
    %546 = vmatmul.f32.gmra.mxu0 %v545
    %v547 = vpop.f32.mrf.mxu0
    %v548 = vadd.f32 %v422, %v547
    %v549 = vand.u32 %v76, 4294901760
    %v550 = vsub.f32 %v76, %v549
    %551 = vmatmul.f32.gmra.mxu0 %v550
    %v552 = vpop.f32.mrf.mxu0
    %v553 = vadd.f32 %v426, %v552
    %v554 = vand.u32 %v78, 4294901760
    %v555 = vsub.f32 %v78, %v554
    %556 = vmatmul.f32.gmra.mxu0 %v555
    %v557 = vpop.f32.mrf.mxu0
    %v558 = vadd.f32 %v430, %v557
    %v559 = vand.u32 %v80, 4294901760
    %v560 = vsub.f32 %v80, %v559
    %561 = vmatmul.f32.gmra.mxu0 %v560
    %v562 = vpop.f32.mrf.mxu0
    %v563 = vadd.f32 %v434, %v562
    %564 = vdwg.mxu0
    %v565 = vand.u32 %v97, 4294901760
    %566 = vmatpush.msra.mxu0 %v565
    %v567 = vand.u32 %v96, 4294901760
    %568 = vmatpush.msra.mxu0 %v567
    %v569 = vand.u32 %v95, 4294901760
    %570 = vmatpush.msra.mxu0 %v569
    %v571 = vand.u32 %v94, 4294901760
    %572 = vmatpush.msra.mxu0 %v571
    %v573 = vand.u32 %v93, 4294901760
    %574 = vmatpush.msra.mxu0 %v573
    %v575 = vand.u32 %v92, 4294901760
    %576 = vmatpush.msra.mxu0 %v575
    %v577 = vand.u32 %v91, 4294901760
    %578 = vmatpush.msra.mxu0 %v577
    %v579 = vand.u32 %v90, 4294901760
    %580 = vmatpush.msra.mxu0 %v579
    %v581 = vand.u32 %v89, 4294901760
    %582 = vmatpush.msra.mxu0 %v581
    %v583 = vand.u32 %v88, 4294901760
    %584 = vmatpush.msra.mxu0 %v583
    %v585 = vand.u32 %v87, 4294901760
    %586 = vmatpush.msra.mxu0 %v585
    %v587 = vand.u32 %v86, 4294901760
    %588 = vmatpush.msra.mxu0 %v587
    %v589 = vand.u32 %v85, 4294901760
    %590 = vmatpush.msra.mxu0 %v589
    %v591 = vand.u32 %v84, 4294901760
    %592 = vmatpush.msra.mxu0 %v591
    %v593 = vand.u32 %v83, 4294901760
    %594 = vmatpush.msra.mxu0 %v593
    %v595 = vand.u32 %v82, 4294901760
    %596 = vmatpush.msra.mxu0 %v595
    %v597 = vand.u32 %v50, 4294901760
    %v598 = vsub.f32 %v50, %v597
    %v599 = vand.u32 %v598, 4294901760
    %600 = vmatmul.f32.gmra.mxu0 %v599
    %v601 = vpop.f32.mrf.mxu0
    %v602 = vadd.f32 %v488, %v601
    %v603 = vand.u32 %v52, 4294901760
    %v604 = vsub.f32 %v52, %v603
    %v605 = vand.u32 %v604, 4294901760
    %606 = vmatmul.f32.gmra.mxu0 %v605
    %v607 = vpop.f32.mrf.mxu0
    %v608 = vadd.f32 %v493, %v607
    %v609 = vand.u32 %v54, 4294901760
    %v610 = vsub.f32 %v54, %v609
    %v611 = vand.u32 %v610, 4294901760
    %612 = vmatmul.f32.gmra.mxu0 %v611
    %v613 = vpop.f32.mrf.mxu0
    %v614 = vadd.f32 %v498, %v613
    %v615 = vand.u32 %v56, 4294901760
    %v616 = vsub.f32 %v56, %v615
    %v617 = vand.u32 %v616, 4294901760
    %618 = vmatmul.f32.gmra.mxu0 %v617
    %v619 = vpop.f32.mrf.mxu0
    %v620 = vadd.f32 %v503, %v619
    %v621 = vand.u32 %v58, 4294901760
    %v622 = vsub.f32 %v58, %v621
    %v623 = vand.u32 %v622, 4294901760
    %624 = vmatmul.f32.gmra.mxu0 %v623
    %v625 = vpop.f32.mrf.mxu0
    %v626 = vadd.f32 %v508, %v625
    %v627 = vand.u32 %v60, 4294901760
    %v628 = vsub.f32 %v60, %v627
    %v629 = vand.u32 %v628, 4294901760
    %630 = vmatmul.f32.gmra.mxu0 %v629
    %v631 = vpop.f32.mrf.mxu0
    %v632 = vadd.f32 %v513, %v631
    %v633 = vand.u32 %v62, 4294901760
    %v634 = vsub.f32 %v62, %v633
    %v635 = vand.u32 %v634, 4294901760
    %636 = vmatmul.f32.gmra.mxu0 %v635
    %v637 = vpop.f32.mrf.mxu0
    %v638 = vadd.f32 %v518, %v637
    %v639 = vand.u32 %v64, 4294901760
    %v640 = vsub.f32 %v64, %v639
    %v641 = vand.u32 %v640, 4294901760
    %642 = vmatmul.f32.gmra.mxu0 %v641
    %v643 = vpop.f32.mrf.mxu0
    %v644 = vadd.f32 %v523, %v643
    %v645 = vand.u32 %v66, 4294901760
    %v646 = vsub.f32 %v66, %v645
    %v647 = vand.u32 %v646, 4294901760
    %648 = vmatmul.f32.gmra.mxu0 %v647
    %v649 = vpop.f32.mrf.mxu0
    %v650 = vadd.f32 %v528, %v649
    %v651 = vand.u32 %v68, 4294901760
    %v652 = vsub.f32 %v68, %v651
    %v653 = vand.u32 %v652, 4294901760
    %654 = vmatmul.f32.gmra.mxu0 %v653
    %v655 = vpop.f32.mrf.mxu0
    %v656 = vadd.f32 %v533, %v655
    %v657 = vand.u32 %v70, 4294901760
    %v658 = vsub.f32 %v70, %v657
    %v659 = vand.u32 %v658, 4294901760
    %660 = vmatmul.f32.gmra.mxu0 %v659
    %v661 = vpop.f32.mrf.mxu0
    %v662 = vadd.f32 %v538, %v661
    %v663 = vand.u32 %v72, 4294901760
    %v664 = vsub.f32 %v72, %v663
    %v665 = vand.u32 %v664, 4294901760
    %666 = vmatmul.f32.gmra.mxu0 %v665
    %v667 = vpop.f32.mrf.mxu0
    %v668 = vadd.f32 %v543, %v667
    %v669 = vand.u32 %v74, 4294901760
    %v670 = vsub.f32 %v74, %v669
    %v671 = vand.u32 %v670, 4294901760
    %672 = vmatmul.f32.gmra.mxu0 %v671
    %v673 = vpop.f32.mrf.mxu0
    %v674 = vadd.f32 %v548, %v673
    %v675 = vand.u32 %v76, 4294901760
    %v676 = vsub.f32 %v76, %v675
    %v677 = vand.u32 %v676, 4294901760
    %678 = vmatmul.f32.gmra.mxu0 %v677
    %v679 = vpop.f32.mrf.mxu0
    %v680 = vadd.f32 %v553, %v679
    %v681 = vand.u32 %v78, 4294901760
    %v682 = vsub.f32 %v78, %v681
    %v683 = vand.u32 %v682, 4294901760
    %684 = vmatmul.f32.gmra.mxu0 %v683
    %v685 = vpop.f32.mrf.mxu0
    %v686 = vadd.f32 %v558, %v685
    %v687 = vand.u32 %v80, 4294901760
    %v688 = vsub.f32 %v80, %v687
    %v689 = vand.u32 %v688, 4294901760
    %690 = vmatmul.f32.gmra.mxu0 %v689
    %v691 = vpop.f32.mrf.mxu0
    %v692 = vadd.f32 %v563, %v691
    %693 = vdwg.mxu0
    %v694 = vand.u32 %v97, 4294901760
    %v695 = vsub.f32 %v97, %v694
    %v696 = vand.u32 %v695, 4294901760
    %697 = vmatpush.msra.mxu0 %v696
    %v698 = vand.u32 %v96, 4294901760
    %v699 = vsub.f32 %v96, %v698
    %v700 = vand.u32 %v699, 4294901760
    %701 = vmatpush.msra.mxu0 %v700
    %v702 = vand.u32 %v95, 4294901760
    %v703 = vsub.f32 %v95, %v702
    %v704 = vand.u32 %v703, 4294901760
    %705 = vmatpush.msra.mxu0 %v704
    %v706 = vand.u32 %v94, 4294901760
    %v707 = vsub.f32 %v94, %v706
    %v708 = vand.u32 %v707, 4294901760
    %709 = vmatpush.msra.mxu0 %v708
    %v710 = vand.u32 %v93, 4294901760
    %v711 = vsub.f32 %v93, %v710
    %v712 = vand.u32 %v711, 4294901760
    %713 = vmatpush.msra.mxu0 %v712
    %v714 = vand.u32 %v92, 4294901760
    %v715 = vsub.f32 %v92, %v714
    %v716 = vand.u32 %v715, 4294901760
    %717 = vmatpush.msra.mxu0 %v716
    %v718 = vand.u32 %v91, 4294901760
    %v719 = vsub.f32 %v91, %v718
    %v720 = vand.u32 %v719, 4294901760
    %721 = vmatpush.msra.mxu0 %v720
    %v722 = vand.u32 %v90, 4294901760
    %v723 = vsub.f32 %v90, %v722
    %v724 = vand.u32 %v723, 4294901760
    %725 = vmatpush.msra.mxu0 %v724
    %v726 = vand.u32 %v89, 4294901760
    %v727 = vsub.f32 %v89, %v726
    %v728 = vand.u32 %v727, 4294901760
    %729 = vmatpush.msra.mxu0 %v728
    %v730 = vand.u32 %v88, 4294901760
    %v731 = vsub.f32 %v88, %v730
    %v732 = vand.u32 %v731, 4294901760
    %733 = vmatpush.msra.mxu0 %v732
    %v734 = vand.u32 %v87, 4294901760
    %v735 = vsub.f32 %v87, %v734
    %v736 = vand.u32 %v735, 4294901760
    %737 = vmatpush.msra.mxu0 %v736
    %v738 = vand.u32 %v86, 4294901760
    %v739 = vsub.f32 %v86, %v738
    %v740 = vand.u32 %v739, 4294901760
    %741 = vmatpush.msra.mxu0 %v740
    %v742 = vand.u32 %v85, 4294901760
    %v743 = vsub.f32 %v85, %v742
    %v744 = vand.u32 %v743, 4294901760
    %745 = vmatpush.msra.mxu0 %v744
    %v746 = vand.u32 %v84, 4294901760
    %v747 = vsub.f32 %v84, %v746
    %v748 = vand.u32 %v747, 4294901760
    %749 = vmatpush.msra.mxu0 %v748
    %v750 = vand.u32 %v83, 4294901760
    %v751 = vsub.f32 %v83, %v750
    %v752 = vand.u32 %v751, 4294901760
    %753 = vmatpush.msra.mxu0 %v752
    %v754 = vand.u32 %v82, 4294901760
    %v755 = vsub.f32 %v82, %v754
    %v756 = vand.u32 %v755, 4294901760
    %757 = vmatpush.msra.mxu0 %v756
    %v758 = vand.u32 %v50, 4294901760
    %759 = vmatmul.f32.gmra.mxu0 %v758
    %v760 = vpop.f32.mrf.mxu0
    %v761 = vadd.f32 %v602, %v760
    %v762 = vand.u32 %v52, 4294901760
    %763 = vmatmul.f32.gmra.mxu0 %v762
    %v764 = vpop.f32.mrf.mxu0
    %v765 = vadd.f32 %v608, %v764
    %v766 = vand.u32 %v54, 4294901760
    %767 = vmatmul.f32.gmra.mxu0 %v766
    %v768 = vpop.f32.mrf.mxu0
    %v769 = vadd.f32 %v614, %v768
    %v770 = vand.u32 %v56, 4294901760
    %771 = vmatmul.f32.gmra.mxu0 %v770
    %v772 = vpop.f32.mrf.mxu0
    %v773 = vadd.f32 %v620, %v772
    %v774 = vand.u32 %v58, 4294901760
    %775 = vmatmul.f32.gmra.mxu0 %v774
    %v776 = vpop.f32.mrf.mxu0
    %v777 = vadd.f32 %v626, %v776
    %v778 = vand.u32 %v60, 4294901760
    %779 = vmatmul.f32.gmra.mxu0 %v778
    %v780 = vpop.f32.mrf.mxu0
    %v781 = vadd.f32 %v632, %v780
    %v782 = vand.u32 %v62, 4294901760
    %783 = vmatmul.f32.gmra.mxu0 %v782
    %v784 = vpop.f32.mrf.mxu0
    %v785 = vadd.f32 %v638, %v784
    %v786 = vand.u32 %v64, 4294901760
    %787 = vmatmul.f32.gmra.mxu0 %v786
    %v788 = vpop.f32.mrf.mxu0
    %v789 = vadd.f32 %v644, %v788
    %v790 = vand.u32 %v66, 4294901760
    %791 = vmatmul.f32.gmra.mxu0 %v790
    %v792 = vpop.f32.mrf.mxu0
    %v793 = vadd.f32 %v650, %v792
    %v794 = vand.u32 %v68, 4294901760
    %795 = vmatmul.f32.gmra.mxu0 %v794
    %v796 = vpop.f32.mrf.mxu0
    %v797 = vadd.f32 %v656, %v796
    %v798 = vand.u32 %v70, 4294901760
    %799 = vmatmul.f32.gmra.mxu0 %v798
    %v800 = vpop.f32.mrf.mxu0
    %v801 = vadd.f32 %v662, %v800
    %v802 = vand.u32 %v72, 4294901760
    %803 = vmatmul.f32.gmra.mxu0 %v802
    %v804 = vpop.f32.mrf.mxu0
    %v805 = vadd.f32 %v668, %v804
    %v806 = vand.u32 %v74, 4294901760
    %807 = vmatmul.f32.gmra.mxu0 %v806
    %v808 = vpop.f32.mrf.mxu0
    %v809 = vadd.f32 %v674, %v808
    %v810 = vand.u32 %v76, 4294901760
    %811 = vmatmul.f32.gmra.mxu0 %v810
    %v812 = vpop.f32.mrf.mxu0
    %v813 = vadd.f32 %v680, %v812
    %v814 = vand.u32 %v78, 4294901760
    %815 = vmatmul.f32.gmra.mxu0 %v814
    %v816 = vpop.f32.mrf.mxu0
    %v817 = vadd.f32 %v686, %v816
    %v818 = vand.u32 %v80, 4294901760
    %819 = vmatmul.f32.gmra.mxu0 %v818
    %v820 = vpop.f32.mrf.mxu0
    %v821 = vadd.f32 %v692, %v820
    %822 = vdwg.mxu0
    %v823 = vand.u32 %v97, 4294901760
    %824 = vmatpush.msra.mxu0 %v823
    %v825 = vand.u32 %v96, 4294901760
    %826 = vmatpush.msra.mxu0 %v825
    %v827 = vand.u32 %v95, 4294901760
    %828 = vmatpush.msra.mxu0 %v827
    %v829 = vand.u32 %v94, 4294901760
    %830 = vmatpush.msra.mxu0 %v829
    %v831 = vand.u32 %v93, 4294901760
    %832 = vmatpush.msra.mxu0 %v831
    %v833 = vand.u32 %v92, 4294901760
    %834 = vmatpush.msra.mxu0 %v833
    %v835 = vand.u32 %v91, 4294901760
    %836 = vmatpush.msra.mxu0 %v835
    %v837 = vand.u32 %v90, 4294901760
    %838 = vmatpush.msra.mxu0 %v837
    %v839 = vand.u32 %v89, 4294901760
    %840 = vmatpush.msra.mxu0 %v839
    %v841 = vand.u32 %v88, 4294901760
    %842 = vmatpush.msra.mxu0 %v841
    %v843 = vand.u32 %v87, 4294901760
    %844 = vmatpush.msra.mxu0 %v843
    %v845 = vand.u32 %v86, 4294901760
    %846 = vmatpush.msra.mxu0 %v845
    %v847 = vand.u32 %v85, 4294901760
    %848 = vmatpush.msra.mxu0 %v847
    %v849 = vand.u32 %v84, 4294901760
    %850 = vmatpush.msra.mxu0 %v849
    %v851 = vand.u32 %v83, 4294901760
    %852 = vmatpush.msra.mxu0 %v851
    %v853 = vand.u32 %v82, 4294901760
    %854 = vmatpush.msra.mxu0 %v853
    %v855 = vand.u32 %v50, 4294901760
    %856 = vmatmul.f32.gmra.mxu0 %v855
    %v857 = vpop.f32.mrf.mxu0
    %v858 = vadd.f32 %v761, %v857
    %v859 = vand.u32 %v52, 4294901760
    %860 = vmatmul.f32.gmra.mxu0 %v859
    %v861 = vpop.f32.mrf.mxu0
    %v862 = vadd.f32 %v765, %v861
    %v863 = vand.u32 %v54, 4294901760
    %864 = vmatmul.f32.gmra.mxu0 %v863
    %v865 = vpop.f32.mrf.mxu0
    %v866 = vadd.f32 %v769, %v865
    %v867 = vand.u32 %v56, 4294901760
    %868 = vmatmul.f32.gmra.mxu0 %v867
    %v869 = vpop.f32.mrf.mxu0
    %v870 = vadd.f32 %v773, %v869
    %v871 = vand.u32 %v58, 4294901760
    %872 = vmatmul.f32.gmra.mxu0 %v871
    %v873 = vpop.f32.mrf.mxu0
    %v874 = vadd.f32 %v777, %v873
    %v875 = vand.u32 %v60, 4294901760
    %876 = vmatmul.f32.gmra.mxu0 %v875
    %v877 = vpop.f32.mrf.mxu0
    %v878 = vadd.f32 %v781, %v877
    %v879 = vand.u32 %v62, 4294901760
    %880 = vmatmul.f32.gmra.mxu0 %v879
    %v881 = vpop.f32.mrf.mxu0
    %v882 = vadd.f32 %v785, %v881
    %v883 = vand.u32 %v64, 4294901760
    %884 = vmatmul.f32.gmra.mxu0 %v883
    %v885 = vpop.f32.mrf.mxu0
    %v886 = vadd.f32 %v789, %v885
    %v887 = vand.u32 %v66, 4294901760
    %888 = vmatmul.f32.gmra.mxu0 %v887
    %v889 = vpop.f32.mrf.mxu0
    %v890 = vadd.f32 %v793, %v889
    %v891 = vand.u32 %v68, 4294901760
    %892 = vmatmul.f32.gmra.mxu0 %v891
    %v893 = vpop.f32.mrf.mxu0
    %v894 = vadd.f32 %v797, %v893
    %v895 = vand.u32 %v70, 4294901760
    %896 = vmatmul.f32.gmra.mxu0 %v895
    %v897 = vpop.f32.mrf.mxu0
    %v898 = vadd.f32 %v801, %v897
    %v899 = vand.u32 %v72, 4294901760
    %900 = vmatmul.f32.gmra.mxu0 %v899
    %v901 = vpop.f32.mrf.mxu0
    %v902 = vadd.f32 %v805, %v901
    %v903 = vand.u32 %v74, 4294901760
    %904 = vmatmul.f32.gmra.mxu0 %v903
    %v905 = vpop.f32.mrf.mxu0
    %v906 = vadd.f32 %v809, %v905
    %v907 = vand.u32 %v76, 4294901760
    %908 = vmatmul.f32.gmra.mxu0 %v907
    %v909 = vpop.f32.mrf.mxu0
    %v910 = vadd.f32 %v813, %v909
    %v911 = vand.u32 %v78, 4294901760
    %912 = vmatmul.f32.gmra.mxu0 %v911
    %v913 = vpop.f32.mrf.mxu0
    %v914 = vadd.f32 %v817, %v913
    %v915 = vand.u32 %v80, 4294901760
    %916 = vmatmul.f32.gmra.mxu0 %v915
    %v917 = vpop.f32.mrf.mxu0
    %v918 = vadd.f32 %v821, %v917
    %919 = vdwg.mxu0
    %v920 = vand.u32 %v113, 4294901760
    %921 = vmatpush.msra.mxu0 %v920
    %v922 = vand.u32 %v112, 4294901760
    %923 = vmatpush.msra.mxu0 %v922
    %v924 = vand.u32 %v111, 4294901760
    %925 = vmatpush.msra.mxu0 %v924
    %v926 = vand.u32 %v110, 4294901760
    %927 = vmatpush.msra.mxu0 %v926
    %v928 = vand.u32 %v109, 4294901760
    %929 = vmatpush.msra.mxu0 %v928
    %v930 = vand.u32 %v108, 4294901760
    %931 = vmatpush.msra.mxu0 %v930
    %v932 = vand.u32 %v107, 4294901760
    %933 = vmatpush.msra.mxu0 %v932
    %v934 = vand.u32 %v106, 4294901760
    %935 = vmatpush.msra.mxu0 %v934
    %v936 = vand.u32 %v105, 4294901760
    %937 = vmatpush.msra.mxu0 %v936
    %v938 = vand.u32 %v104, 4294901760
    %939 = vmatpush.msra.mxu0 %v938
    %v940 = vand.u32 %v103, 4294901760
    %941 = vmatpush.msra.mxu0 %v940
    %v942 = vand.u32 %v102, 4294901760
    %943 = vmatpush.msra.mxu0 %v942
    %v944 = vand.u32 %v101, 4294901760
    %945 = vmatpush.msra.mxu0 %v944
    %v946 = vand.u32 %v100, 4294901760
    %947 = vmatpush.msra.mxu0 %v946
    %v948 = vand.u32 %v99, 4294901760
    %949 = vmatpush.msra.mxu0 %v948
    %v950 = vand.u32 %v98, 4294901760
    %951 = vmatpush.msra.mxu0 %v950
    %v952 = vand.u32 %v51, 4294901760
    %v953 = vsub.f32 %v51, %v952
    %v954 = vand.u32 %v953, 4294901760
    %v955 = vsub.f32 %v953, %v954
    %v956 = vand.u32 %v955, 4294901760
    %957 = vmatmul.f32.gmra.mxu0 %v956
    %v958 = vpop.f32.mrf.mxu0
    %v959 = vadd.f32 %v858, %v958
    %v960 = vand.u32 %v53, 4294901760
    %v961 = vsub.f32 %v53, %v960
    %v962 = vand.u32 %v961, 4294901760
    %v963 = vsub.f32 %v961, %v962
    %v964 = vand.u32 %v963, 4294901760
    %965 = vmatmul.f32.gmra.mxu0 %v964
    %v966 = vpop.f32.mrf.mxu0
    %v967 = vadd.f32 %v862, %v966
    %v968 = vand.u32 %v55, 4294901760
    %v969 = vsub.f32 %v55, %v968
    %v970 = vand.u32 %v969, 4294901760
    %v971 = vsub.f32 %v969, %v970
    %v972 = vand.u32 %v971, 4294901760
    %973 = vmatmul.f32.gmra.mxu0 %v972
    %v974 = vpop.f32.mrf.mxu0
    %v975 = vadd.f32 %v866, %v974
    %v976 = vand.u32 %v57, 4294901760
    %v977 = vsub.f32 %v57, %v976
    %v978 = vand.u32 %v977, 4294901760
    %v979 = vsub.f32 %v977, %v978
    %v980 = vand.u32 %v979, 4294901760
    %981 = vmatmul.f32.gmra.mxu0 %v980
    %v982 = vpop.f32.mrf.mxu0
    %v983 = vadd.f32 %v870, %v982
    %v984 = vand.u32 %v59, 4294901760
    %v985 = vsub.f32 %v59, %v984
    %v986 = vand.u32 %v985, 4294901760
    %v987 = vsub.f32 %v985, %v986
    %v988 = vand.u32 %v987, 4294901760
    %989 = vmatmul.f32.gmra.mxu0 %v988
    %v990 = vpop.f32.mrf.mxu0
    %v991 = vadd.f32 %v874, %v990
    %v992 = vand.u32 %v61, 4294901760
    %v993 = vsub.f32 %v61, %v992
    %v994 = vand.u32 %v993, 4294901760
    %v995 = vsub.f32 %v993, %v994
    %v996 = vand.u32 %v995, 4294901760
    %997 = vmatmul.f32.gmra.mxu0 %v996
    %v998 = vpop.f32.mrf.mxu0
    %v999 = vadd.f32 %v878, %v998
    %v1000 = vand.u32 %v63, 4294901760
    %v1001 = vsub.f32 %v63, %v1000
    %v1002 = vand.u32 %v1001, 4294901760
    %v1003 = vsub.f32 %v1001, %v1002
    %v1004 = vand.u32 %v1003, 4294901760
    %1005 = vmatmul.f32.gmra.mxu0 %v1004
    %v1006 = vpop.f32.mrf.mxu0
    %v1007 = vadd.f32 %v882, %v1006
    %v1008 = vand.u32 %v65, 4294901760
    %v1009 = vsub.f32 %v65, %v1008
    %v1010 = vand.u32 %v1009, 4294901760
    %v1011 = vsub.f32 %v1009, %v1010
    %v1012 = vand.u32 %v1011, 4294901760
    %1013 = vmatmul.f32.gmra.mxu0 %v1012
    %v1014 = vpop.f32.mrf.mxu0
    %v1015 = vadd.f32 %v886, %v1014
    %v1016 = vand.u32 %v67, 4294901760
    %v1017 = vsub.f32 %v67, %v1016
    %v1018 = vand.u32 %v1017, 4294901760
    %v1019 = vsub.f32 %v1017, %v1018
    %v1020 = vand.u32 %v1019, 4294901760
    %1021 = vmatmul.f32.gmra.mxu0 %v1020
    %v1022 = vpop.f32.mrf.mxu0
    %v1023 = vadd.f32 %v890, %v1022
    %v1024 = vand.u32 %v69, 4294901760
    %v1025 = vsub.f32 %v69, %v1024
    %v1026 = vand.u32 %v1025, 4294901760
    %v1027 = vsub.f32 %v1025, %v1026
    %v1028 = vand.u32 %v1027, 4294901760
    %1029 = vmatmul.f32.gmra.mxu0 %v1028
    %v1030 = vpop.f32.mrf.mxu0
    %v1031 = vadd.f32 %v894, %v1030
    %v1032 = vand.u32 %v71, 4294901760
    %v1033 = vsub.f32 %v71, %v1032
    %v1034 = vand.u32 %v1033, 4294901760
    %v1035 = vsub.f32 %v1033, %v1034
    %v1036 = vand.u32 %v1035, 4294901760
    %1037 = vmatmul.f32.gmra.mxu0 %v1036
    %v1038 = vpop.f32.mrf.mxu0
    %v1039 = vadd.f32 %v898, %v1038
    %v1040 = vand.u32 %v73, 4294901760
    %v1041 = vsub.f32 %v73, %v1040
    %v1042 = vand.u32 %v1041, 4294901760
    %v1043 = vsub.f32 %v1041, %v1042
    %v1044 = vand.u32 %v1043, 4294901760
    %1045 = vmatmul.f32.gmra.mxu0 %v1044
    %v1046 = vpop.f32.mrf.mxu0
    %v1047 = vadd.f32 %v902, %v1046
    %v1048 = vand.u32 %v75, 4294901760
    %v1049 = vsub.f32 %v75, %v1048
    %v1050 = vand.u32 %v1049, 4294901760
    %v1051 = vsub.f32 %v1049, %v1050
    %v1052 = vand.u32 %v1051, 4294901760
    %1053 = vmatmul.f32.gmra.mxu0 %v1052
    %v1054 = vpop.f32.mrf.mxu0
    %v1055 = vadd.f32 %v906, %v1054
    %v1056 = vand.u32 %v77, 4294901760
    %v1057 = vsub.f32 %v77, %v1056
    %v1058 = vand.u32 %v1057, 4294901760
    %v1059 = vsub.f32 %v1057, %v1058
    %v1060 = vand.u32 %v1059, 4294901760
    %1061 = vmatmul.f32.gmra.mxu0 %v1060
    %v1062 = vpop.f32.mrf.mxu0
    %v1063 = vadd.f32 %v910, %v1062
    %v1064 = vand.u32 %v79, 4294901760
    %v1065 = vsub.f32 %v79, %v1064
    %v1066 = vand.u32 %v1065, 4294901760
    %v1067 = vsub.f32 %v1065, %v1066
    %v1068 = vand.u32 %v1067, 4294901760
    %1069 = vmatmul.f32.gmra.mxu0 %v1068
    %v1070 = vpop.f32.mrf.mxu0
    %v1071 = vadd.f32 %v914, %v1070
    %v1072 = vand.u32 %v81, 4294901760
    %v1073 = vsub.f32 %v81, %v1072
    %v1074 = vand.u32 %v1073, 4294901760
    %v1075 = vsub.f32 %v1073, %v1074
    %v1076 = vand.u32 %v1075, 4294901760
    %1077 = vmatmul.f32.gmra.mxu0 %v1076
    %v1078 = vpop.f32.mrf.mxu0
    %v1079 = vadd.f32 %v918, %v1078
    %1080 = vdwg.mxu0
    %v1081 = vand.u32 %v113, 4294901760
    %v1082 = vsub.f32 %v113, %v1081
    %v1083 = vand.u32 %v1082, 4294901760
    %v1084 = vsub.f32 %v1082, %v1083
    %v1085 = vand.u32 %v1084, 4294901760
    %1086 = vmatpush.msra.mxu0 %v1085
    %v1087 = vand.u32 %v112, 4294901760
    %v1088 = vsub.f32 %v112, %v1087
    %v1089 = vand.u32 %v1088, 4294901760
    %v1090 = vsub.f32 %v1088, %v1089
    %v1091 = vand.u32 %v1090, 4294901760
    %1092 = vmatpush.msra.mxu0 %v1091
    %v1093 = vand.u32 %v111, 4294901760
    %v1094 = vsub.f32 %v111, %v1093
    %v1095 = vand.u32 %v1094, 4294901760
    %v1096 = vsub.f32 %v1094, %v1095
    %v1097 = vand.u32 %v1096, 4294901760
    %1098 = vmatpush.msra.mxu0 %v1097
    %v1099 = vand.u32 %v110, 4294901760
    %v1100 = vsub.f32 %v110, %v1099
    %v1101 = vand.u32 %v1100, 4294901760
    %v1102 = vsub.f32 %v1100, %v1101
    %v1103 = vand.u32 %v1102, 4294901760
    %1104 = vmatpush.msra.mxu0 %v1103
    %v1105 = vand.u32 %v109, 4294901760
    %v1106 = vsub.f32 %v109, %v1105
    %v1107 = vand.u32 %v1106, 4294901760
    %v1108 = vsub.f32 %v1106, %v1107
    %v1109 = vand.u32 %v1108, 4294901760
    %1110 = vmatpush.msra.mxu0 %v1109
    %v1111 = vand.u32 %v108, 4294901760
    %v1112 = vsub.f32 %v108, %v1111
    %v1113 = vand.u32 %v1112, 4294901760
    %v1114 = vsub.f32 %v1112, %v1113
    %v1115 = vand.u32 %v1114, 4294901760
    %1116 = vmatpush.msra.mxu0 %v1115
    %v1117 = vand.u32 %v107, 4294901760
    %v1118 = vsub.f32 %v107, %v1117
    %v1119 = vand.u32 %v1118, 4294901760
    %v1120 = vsub.f32 %v1118, %v1119
    %v1121 = vand.u32 %v1120, 4294901760
    %1122 = vmatpush.msra.mxu0 %v1121
    %v1123 = vand.u32 %v106, 4294901760
    %v1124 = vsub.f32 %v106, %v1123
    %v1125 = vand.u32 %v1124, 4294901760
    %v1126 = vsub.f32 %v1124, %v1125
    %v1127 = vand.u32 %v1126, 4294901760
    %1128 = vmatpush.msra.mxu0 %v1127
    %v1129 = vand.u32 %v105, 4294901760
    %v1130 = vsub.f32 %v105, %v1129
    %v1131 = vand.u32 %v1130, 4294901760
    %v1132 = vsub.f32 %v1130, %v1131
    %v1133 = vand.u32 %v1132, 4294901760
    %1134 = vmatpush.msra.mxu0 %v1133
    %v1135 = vand.u32 %v104, 4294901760
    %v1136 = vsub.f32 %v104, %v1135
    %v1137 = vand.u32 %v1136, 4294901760
    %v1138 = vsub.f32 %v1136, %v1137
    %v1139 = vand.u32 %v1138, 4294901760
    %1140 = vmatpush.msra.mxu0 %v1139
    %v1141 = vand.u32 %v103, 4294901760
    %v1142 = vsub.f32 %v103, %v1141
    %v1143 = vand.u32 %v1142, 4294901760
    %v1144 = vsub.f32 %v1142, %v1143
    %v1145 = vand.u32 %v1144, 4294901760
    %1146 = vmatpush.msra.mxu0 %v1145
    %v1147 = vand.u32 %v102, 4294901760
    %v1148 = vsub.f32 %v102, %v1147
    %v1149 = vand.u32 %v1148, 4294901760
    %v1150 = vsub.f32 %v1148, %v1149
    %v1151 = vand.u32 %v1150, 4294901760
    %1152 = vmatpush.msra.mxu0 %v1151
    %v1153 = vand.u32 %v101, 4294901760
    %v1154 = vsub.f32 %v101, %v1153
    %v1155 = vand.u32 %v1154, 4294901760
    %v1156 = vsub.f32 %v1154, %v1155
    %v1157 = vand.u32 %v1156, 4294901760
    %1158 = vmatpush.msra.mxu0 %v1157
    %v1159 = vand.u32 %v100, 4294901760
    %v1160 = vsub.f32 %v100, %v1159
    %v1161 = vand.u32 %v1160, 4294901760
    %v1162 = vsub.f32 %v1160, %v1161
    %v1163 = vand.u32 %v1162, 4294901760
    %1164 = vmatpush.msra.mxu0 %v1163
    %v1165 = vand.u32 %v99, 4294901760
    %v1166 = vsub.f32 %v99, %v1165
    %v1167 = vand.u32 %v1166, 4294901760
    %v1168 = vsub.f32 %v1166, %v1167
    %v1169 = vand.u32 %v1168, 4294901760
    %1170 = vmatpush.msra.mxu0 %v1169
    %v1171 = vand.u32 %v98, 4294901760
    %v1172 = vsub.f32 %v98, %v1171
    %v1173 = vand.u32 %v1172, 4294901760
    %v1174 = vsub.f32 %v1172, %v1173
    %v1175 = vand.u32 %v1174, 4294901760
    %1176 = vmatpush.msra.mxu0 %v1175
    %v1177 = vand.u32 %v51, 4294901760
    %1178 = vmatmul.f32.gmra.mxu0 %v1177
    %v1179 = vpop.f32.mrf.mxu0
    %v1180 = vadd.f32 %v959, %v1179
    %v1181 = vand.u32 %v53, 4294901760
    %1182 = vmatmul.f32.gmra.mxu0 %v1181
    %v1183 = vpop.f32.mrf.mxu0
    %v1184 = vadd.f32 %v967, %v1183
    %v1185 = vand.u32 %v55, 4294901760
    %1186 = vmatmul.f32.gmra.mxu0 %v1185
    %v1187 = vpop.f32.mrf.mxu0
    %v1188 = vadd.f32 %v975, %v1187
    %v1189 = vand.u32 %v57, 4294901760
    %1190 = vmatmul.f32.gmra.mxu0 %v1189
    %v1191 = vpop.f32.mrf.mxu0
    %v1192 = vadd.f32 %v983, %v1191
    %v1193 = vand.u32 %v59, 4294901760
    %1194 = vmatmul.f32.gmra.mxu0 %v1193
    %v1195 = vpop.f32.mrf.mxu0
    %v1196 = vadd.f32 %v991, %v1195
    %v1197 = vand.u32 %v61, 4294901760
    %1198 = vmatmul.f32.gmra.mxu0 %v1197
    %v1199 = vpop.f32.mrf.mxu0
    %v1200 = vadd.f32 %v999, %v1199
    %v1201 = vand.u32 %v63, 4294901760
    %1202 = vmatmul.f32.gmra.mxu0 %v1201
    %v1203 = vpop.f32.mrf.mxu0
    %v1204 = vadd.f32 %v1007, %v1203
    %v1205 = vand.u32 %v65, 4294901760
    %1206 = vmatmul.f32.gmra.mxu0 %v1205
    %v1207 = vpop.f32.mrf.mxu0
    %v1208 = vadd.f32 %v1015, %v1207
    %v1209 = vand.u32 %v67, 4294901760
    %1210 = vmatmul.f32.gmra.mxu0 %v1209
    %v1211 = vpop.f32.mrf.mxu0
    %v1212 = vadd.f32 %v1023, %v1211
    %v1213 = vand.u32 %v69, 4294901760
    %1214 = vmatmul.f32.gmra.mxu0 %v1213
    %v1215 = vpop.f32.mrf.mxu0
    %v1216 = vadd.f32 %v1031, %v1215
    %v1217 = vand.u32 %v71, 4294901760
    %1218 = vmatmul.f32.gmra.mxu0 %v1217
    %v1219 = vpop.f32.mrf.mxu0
    %v1220 = vadd.f32 %v1039, %v1219
    %v1221 = vand.u32 %v73, 4294901760
    %1222 = vmatmul.f32.gmra.mxu0 %v1221
    %v1223 = vpop.f32.mrf.mxu0
    %v1224 = vadd.f32 %v1047, %v1223
    %v1225 = vand.u32 %v75, 4294901760
    %1226 = vmatmul.f32.gmra.mxu0 %v1225
    %v1227 = vpop.f32.mrf.mxu0
    %v1228 = vadd.f32 %v1055, %v1227
    %v1229 = vand.u32 %v77, 4294901760
    %1230 = vmatmul.f32.gmra.mxu0 %v1229
    %v1231 = vpop.f32.mrf.mxu0
    %v1232 = vadd.f32 %v1063, %v1231
    %v1233 = vand.u32 %v79, 4294901760
    %1234 = vmatmul.f32.gmra.mxu0 %v1233
    %v1235 = vpop.f32.mrf.mxu0
    %v1236 = vadd.f32 %v1071, %v1235
    %v1237 = vand.u32 %v81, 4294901760
    %1238 = vmatmul.f32.gmra.mxu0 %v1237
    %v1239 = vpop.f32.mrf.mxu0
    %v1240 = vadd.f32 %v1079, %v1239
    %1241 = vdwg.mxu0
    %v1242 = vand.u32 %v113, 4294901760
    %v1243 = vsub.f32 %v113, %v1242
    %1244 = vmatpush.msra.mxu0 %v1243
    %v1245 = vand.u32 %v112, 4294901760
    %v1246 = vsub.f32 %v112, %v1245
    %1247 = vmatpush.msra.mxu0 %v1246
    %v1248 = vand.u32 %v111, 4294901760
    %v1249 = vsub.f32 %v111, %v1248
    %1250 = vmatpush.msra.mxu0 %v1249
    %v1251 = vand.u32 %v110, 4294901760
    %v1252 = vsub.f32 %v110, %v1251
    %1253 = vmatpush.msra.mxu0 %v1252
    %v1254 = vand.u32 %v109, 4294901760
    %v1255 = vsub.f32 %v109, %v1254
    %1256 = vmatpush.msra.mxu0 %v1255
    %v1257 = vand.u32 %v108, 4294901760
    %v1258 = vsub.f32 %v108, %v1257
    %1259 = vmatpush.msra.mxu0 %v1258
    %v1260 = vand.u32 %v107, 4294901760
    %v1261 = vsub.f32 %v107, %v1260
    %1262 = vmatpush.msra.mxu0 %v1261
    %v1263 = vand.u32 %v106, 4294901760
    %v1264 = vsub.f32 %v106, %v1263
    %1265 = vmatpush.msra.mxu0 %v1264
    %v1266 = vand.u32 %v105, 4294901760
    %v1267 = vsub.f32 %v105, %v1266
    %1268 = vmatpush.msra.mxu0 %v1267
    %v1269 = vand.u32 %v104, 4294901760
    %v1270 = vsub.f32 %v104, %v1269
    %1271 = vmatpush.msra.mxu0 %v1270
    %v1272 = vand.u32 %v103, 4294901760
    %v1273 = vsub.f32 %v103, %v1272
    %1274 = vmatpush.msra.mxu0 %v1273
    %v1275 = vand.u32 %v102, 4294901760
    %v1276 = vsub.f32 %v102, %v1275
    %1277 = vmatpush.msra.mxu0 %v1276
    %v1278 = vand.u32 %v101, 4294901760
    %v1279 = vsub.f32 %v101, %v1278
    %1280 = vmatpush.msra.mxu0 %v1279
    %v1281 = vand.u32 %v100, 4294901760
    %v1282 = vsub.f32 %v100, %v1281
    %1283 = vmatpush.msra.mxu0 %v1282
    %v1284 = vand.u32 %v99, 4294901760
    %v1285 = vsub.f32 %v99, %v1284
    %1286 = vmatpush.msra.mxu0 %v1285
    %v1287 = vand.u32 %v98, 4294901760
    %v1288 = vsub.f32 %v98, %v1287
    %1289 = vmatpush.msra.mxu0 %v1288
    %v1290 = vand.u32 %v51, 4294901760
    %v1291 = vsub.f32 %v51, %v1290
    %1292 = vmatmul.f32.gmra.mxu0 %v1291
    %v1293 = vpop.f32.mrf.mxu0
    %v1294 = vadd.f32 %v1180, %v1293
    %v1295 = vand.u32 %v53, 4294901760
    %v1296 = vsub.f32 %v53, %v1295
    %1297 = vmatmul.f32.gmra.mxu0 %v1296
    %v1298 = vpop.f32.mrf.mxu0
    %v1299 = vadd.f32 %v1184, %v1298
    %v1300 = vand.u32 %v55, 4294901760
    %v1301 = vsub.f32 %v55, %v1300
    %1302 = vmatmul.f32.gmra.mxu0 %v1301
    %v1303 = vpop.f32.mrf.mxu0
    %v1304 = vadd.f32 %v1188, %v1303
    %v1305 = vand.u32 %v57, 4294901760
    %v1306 = vsub.f32 %v57, %v1305
    %1307 = vmatmul.f32.gmra.mxu0 %v1306
    %v1308 = vpop.f32.mrf.mxu0
    %v1309 = vadd.f32 %v1192, %v1308
    %v1310 = vand.u32 %v59, 4294901760
    %v1311 = vsub.f32 %v59, %v1310
    %1312 = vmatmul.f32.gmra.mxu0 %v1311
    %v1313 = vpop.f32.mrf.mxu0
    %v1314 = vadd.f32 %v1196, %v1313
    %v1315 = vand.u32 %v61, 4294901760
    %v1316 = vsub.f32 %v61, %v1315
    %1317 = vmatmul.f32.gmra.mxu0 %v1316
    %v1318 = vpop.f32.mrf.mxu0
    %v1319 = vadd.f32 %v1200, %v1318
    %v1320 = vand.u32 %v63, 4294901760
    %v1321 = vsub.f32 %v63, %v1320
    %1322 = vmatmul.f32.gmra.mxu0 %v1321
    %v1323 = vpop.f32.mrf.mxu0
    %v1324 = vadd.f32 %v1204, %v1323
    %v1325 = vand.u32 %v65, 4294901760
    %v1326 = vsub.f32 %v65, %v1325
    %1327 = vmatmul.f32.gmra.mxu0 %v1326
    %v1328 = vpop.f32.mrf.mxu0
    %v1329 = vadd.f32 %v1208, %v1328
    %v1330 = vand.u32 %v67, 4294901760
    %v1331 = vsub.f32 %v67, %v1330
    %1332 = vmatmul.f32.gmra.mxu0 %v1331
    %v1333 = vpop.f32.mrf.mxu0
    %v1334 = vadd.f32 %v1212, %v1333
    %v1335 = vand.u32 %v69, 4294901760
    %v1336 = vsub.f32 %v69, %v1335
    %1337 = vmatmul.f32.gmra.mxu0 %v1336
    %v1338 = vpop.f32.mrf.mxu0
    %v1339 = vadd.f32 %v1216, %v1338
    %v1340 = vand.u32 %v71, 4294901760
    %v1341 = vsub.f32 %v71, %v1340
    %1342 = vmatmul.f32.gmra.mxu0 %v1341
    %v1343 = vpop.f32.mrf.mxu0
    %v1344 = vadd.f32 %v1220, %v1343
    %v1345 = vand.u32 %v73, 4294901760
    %v1346 = vsub.f32 %v73, %v1345
    %1347 = vmatmul.f32.gmra.mxu0 %v1346
    %v1348 = vpop.f32.mrf.mxu0
    %v1349 = vadd.f32 %v1224, %v1348
    %v1350 = vand.u32 %v75, 4294901760
    %v1351 = vsub.f32 %v75, %v1350
    %1352 = vmatmul.f32.gmra.mxu0 %v1351
    %v1353 = vpop.f32.mrf.mxu0
    %v1354 = vadd.f32 %v1228, %v1353
    %v1355 = vand.u32 %v77, 4294901760
    %v1356 = vsub.f32 %v77, %v1355
    %1357 = vmatmul.f32.gmra.mxu0 %v1356
    %v1358 = vpop.f32.mrf.mxu0
    %v1359 = vadd.f32 %v1232, %v1358
    %v1360 = vand.u32 %v79, 4294901760
    %v1361 = vsub.f32 %v79, %v1360
    %1362 = vmatmul.f32.gmra.mxu0 %v1361
    %v1363 = vpop.f32.mrf.mxu0
    %v1364 = vadd.f32 %v1236, %v1363
    %v1365 = vand.u32 %v81, 4294901760
    %v1366 = vsub.f32 %v81, %v1365
    %1367 = vmatmul.f32.gmra.mxu0 %v1366
    %v1368 = vpop.f32.mrf.mxu0
    %v1369 = vadd.f32 %v1240, %v1368
    %1370 = vdwg.mxu0
    %v1371 = vand.u32 %v113, 4294901760
    %1372 = vmatpush.msra.mxu0 %v1371
    %v1373 = vand.u32 %v112, 4294901760
    %1374 = vmatpush.msra.mxu0 %v1373
    %v1375 = vand.u32 %v111, 4294901760
    %1376 = vmatpush.msra.mxu0 %v1375
    %v1377 = vand.u32 %v110, 4294901760
    %1378 = vmatpush.msra.mxu0 %v1377
    %v1379 = vand.u32 %v109, 4294901760
    %1380 = vmatpush.msra.mxu0 %v1379
    %v1381 = vand.u32 %v108, 4294901760
    %1382 = vmatpush.msra.mxu0 %v1381
    %v1383 = vand.u32 %v107, 4294901760
    %1384 = vmatpush.msra.mxu0 %v1383
    %v1385 = vand.u32 %v106, 4294901760
    %1386 = vmatpush.msra.mxu0 %v1385
    %v1387 = vand.u32 %v105, 4294901760
    %1388 = vmatpush.msra.mxu0 %v1387
    %v1389 = vand.u32 %v104, 4294901760
    %1390 = vmatpush.msra.mxu0 %v1389
    %v1391 = vand.u32 %v103, 4294901760
    %1392 = vmatpush.msra.mxu0 %v1391
    %v1393 = vand.u32 %v102, 4294901760
    %1394 = vmatpush.msra.mxu0 %v1393
    %v1395 = vand.u32 %v101, 4294901760
    %1396 = vmatpush.msra.mxu0 %v1395
    %v1397 = vand.u32 %v100, 4294901760
    %1398 = vmatpush.msra.mxu0 %v1397
    %v1399 = vand.u32 %v99, 4294901760
    %1400 = vmatpush.msra.mxu0 %v1399
    %v1401 = vand.u32 %v98, 4294901760
    %1402 = vmatpush.msra.mxu0 %v1401
    %v1403 = vand.u32 %v51, 4294901760
    %v1404 = vsub.f32 %v51, %v1403
    %v1405 = vand.u32 %v1404, 4294901760
    %1406 = vmatmul.f32.gmra.mxu0 %v1405
    %v1407 = vpop.f32.mrf.mxu0
    %v1408 = vadd.f32 %v1294, %v1407
    %v1409 = vand.u32 %v53, 4294901760
    %v1410 = vsub.f32 %v53, %v1409
    %v1411 = vand.u32 %v1410, 4294901760
    %1412 = vmatmul.f32.gmra.mxu0 %v1411
    %v1413 = vpop.f32.mrf.mxu0
    %v1414 = vadd.f32 %v1299, %v1413
    %v1415 = vand.u32 %v55, 4294901760
    %v1416 = vsub.f32 %v55, %v1415
    %v1417 = vand.u32 %v1416, 4294901760
    %1418 = vmatmul.f32.gmra.mxu0 %v1417
    %v1419 = vpop.f32.mrf.mxu0
    %v1420 = vadd.f32 %v1304, %v1419
    %v1421 = vand.u32 %v57, 4294901760
    %v1422 = vsub.f32 %v57, %v1421
    %v1423 = vand.u32 %v1422, 4294901760
    %1424 = vmatmul.f32.gmra.mxu0 %v1423
    %v1425 = vpop.f32.mrf.mxu0
    %v1426 = vadd.f32 %v1309, %v1425
    %v1427 = vand.u32 %v59, 4294901760
    %v1428 = vsub.f32 %v59, %v1427
    %v1429 = vand.u32 %v1428, 4294901760
    %1430 = vmatmul.f32.gmra.mxu0 %v1429
    %v1431 = vpop.f32.mrf.mxu0
    %v1432 = vadd.f32 %v1314, %v1431
    %v1433 = vand.u32 %v61, 4294901760
    %v1434 = vsub.f32 %v61, %v1433
    %v1435 = vand.u32 %v1434, 4294901760
    %1436 = vmatmul.f32.gmra.mxu0 %v1435
    %v1437 = vpop.f32.mrf.mxu0
    %v1438 = vadd.f32 %v1319, %v1437
    %v1439 = vand.u32 %v63, 4294901760
    %v1440 = vsub.f32 %v63, %v1439
    %v1441 = vand.u32 %v1440, 4294901760
    %1442 = vmatmul.f32.gmra.mxu0 %v1441
    %v1443 = vpop.f32.mrf.mxu0
    %v1444 = vadd.f32 %v1324, %v1443
    %v1445 = vand.u32 %v65, 4294901760
    %v1446 = vsub.f32 %v65, %v1445
    %v1447 = vand.u32 %v1446, 4294901760
    %1448 = vmatmul.f32.gmra.mxu0 %v1447
    %v1449 = vpop.f32.mrf.mxu0
    %v1450 = vadd.f32 %v1329, %v1449
    %v1451 = vand.u32 %v67, 4294901760
    %v1452 = vsub.f32 %v67, %v1451
    %v1453 = vand.u32 %v1452, 4294901760
    %1454 = vmatmul.f32.gmra.mxu0 %v1453
    %v1455 = vpop.f32.mrf.mxu0
    %v1456 = vadd.f32 %v1334, %v1455
    %v1457 = vand.u32 %v69, 4294901760
    %v1458 = vsub.f32 %v69, %v1457
    %v1459 = vand.u32 %v1458, 4294901760
    %1460 = vmatmul.f32.gmra.mxu0 %v1459
    %v1461 = vpop.f32.mrf.mxu0
    %v1462 = vadd.f32 %v1339, %v1461
    %v1463 = vand.u32 %v71, 4294901760
    %v1464 = vsub.f32 %v71, %v1463
    %v1465 = vand.u32 %v1464, 4294901760
    %1466 = vmatmul.f32.gmra.mxu0 %v1465
    %v1467 = vpop.f32.mrf.mxu0
    %v1468 = vadd.f32 %v1344, %v1467
    %v1469 = vand.u32 %v73, 4294901760
    %v1470 = vsub.f32 %v73, %v1469
    %v1471 = vand.u32 %v1470, 4294901760
    %1472 = vmatmul.f32.gmra.mxu0 %v1471
    %v1473 = vpop.f32.mrf.mxu0
    %v1474 = vadd.f32 %v1349, %v1473
    %v1475 = vand.u32 %v75, 4294901760
    %v1476 = vsub.f32 %v75, %v1475
    %v1477 = vand.u32 %v1476, 4294901760
    %1478 = vmatmul.f32.gmra.mxu0 %v1477
    %v1479 = vpop.f32.mrf.mxu0
    %v1480 = vadd.f32 %v1354, %v1479
    %v1481 = vand.u32 %v77, 4294901760
    %v1482 = vsub.f32 %v77, %v1481
    %v1483 = vand.u32 %v1482, 4294901760
    %1484 = vmatmul.f32.gmra.mxu0 %v1483
    %v1485 = vpop.f32.mrf.mxu0
    %v1486 = vadd.f32 %v1359, %v1485
    %v1487 = vand.u32 %v79, 4294901760
    %v1488 = vsub.f32 %v79, %v1487
    %v1489 = vand.u32 %v1488, 4294901760
    %1490 = vmatmul.f32.gmra.mxu0 %v1489
    %v1491 = vpop.f32.mrf.mxu0
    %v1492 = vadd.f32 %v1364, %v1491
    %v1493 = vand.u32 %v81, 4294901760
    %v1494 = vsub.f32 %v81, %v1493
    %v1495 = vand.u32 %v1494, 4294901760
    %1496 = vmatmul.f32.gmra.mxu0 %v1495
    %v1497 = vpop.f32.mrf.mxu0
    %v1498 = vadd.f32 %v1369, %v1497
    %1499 = vdwg.mxu0
    %v1500 = vand.u32 %v113, 4294901760
    %v1501 = vsub.f32 %v113, %v1500
    %v1502 = vand.u32 %v1501, 4294901760
    %1503 = vmatpush.msra.mxu0 %v1502
    %v1504 = vand.u32 %v112, 4294901760
    %v1505 = vsub.f32 %v112, %v1504
    %v1506 = vand.u32 %v1505, 4294901760
    %1507 = vmatpush.msra.mxu0 %v1506
    %v1508 = vand.u32 %v111, 4294901760
    %v1509 = vsub.f32 %v111, %v1508
    %v1510 = vand.u32 %v1509, 4294901760
    %1511 = vmatpush.msra.mxu0 %v1510
    %v1512 = vand.u32 %v110, 4294901760
    %v1513 = vsub.f32 %v110, %v1512
    %v1514 = vand.u32 %v1513, 4294901760
    %1515 = vmatpush.msra.mxu0 %v1514
    %v1516 = vand.u32 %v109, 4294901760
    %v1517 = vsub.f32 %v109, %v1516
    %v1518 = vand.u32 %v1517, 4294901760
    %1519 = vmatpush.msra.mxu0 %v1518
    %v1520 = vand.u32 %v108, 4294901760
    %v1521 = vsub.f32 %v108, %v1520
    %v1522 = vand.u32 %v1521, 4294901760
    %1523 = vmatpush.msra.mxu0 %v1522
    %v1524 = vand.u32 %v107, 4294901760
    %v1525 = vsub.f32 %v107, %v1524
    %v1526 = vand.u32 %v1525, 4294901760
    %1527 = vmatpush.msra.mxu0 %v1526
    %v1528 = vand.u32 %v106, 4294901760
    %v1529 = vsub.f32 %v106, %v1528
    %v1530 = vand.u32 %v1529, 4294901760
    %1531 = vmatpush.msra.mxu0 %v1530
    %v1532 = vand.u32 %v105, 4294901760
    %v1533 = vsub.f32 %v105, %v1532
    %v1534 = vand.u32 %v1533, 4294901760
    %1535 = vmatpush.msra.mxu0 %v1534
    %v1536 = vand.u32 %v104, 4294901760
    %v1537 = vsub.f32 %v104, %v1536
    %v1538 = vand.u32 %v1537, 4294901760
    %1539 = vmatpush.msra.mxu0 %v1538
    %v1540 = vand.u32 %v103, 4294901760
    %v1541 = vsub.f32 %v103, %v1540
    %v1542 = vand.u32 %v1541, 4294901760
    %1543 = vmatpush.msra.mxu0 %v1542
    %v1544 = vand.u32 %v102, 4294901760
    %v1545 = vsub.f32 %v102, %v1544
    %v1546 = vand.u32 %v1545, 4294901760
    %1547 = vmatpush.msra.mxu0 %v1546
    %v1548 = vand.u32 %v101, 4294901760
    %v1549 = vsub.f32 %v101, %v1548
    %v1550 = vand.u32 %v1549, 4294901760
    %1551 = vmatpush.msra.mxu0 %v1550
    %v1552 = vand.u32 %v100, 4294901760
    %v1553 = vsub.f32 %v100, %v1552
    %v1554 = vand.u32 %v1553, 4294901760
    %1555 = vmatpush.msra.mxu0 %v1554
    %v1556 = vand.u32 %v99, 4294901760
    %v1557 = vsub.f32 %v99, %v1556
    %v1558 = vand.u32 %v1557, 4294901760
    %1559 = vmatpush.msra.mxu0 %v1558
    %v1560 = vand.u32 %v98, 4294901760
    %v1561 = vsub.f32 %v98, %v1560
    %v1562 = vand.u32 %v1561, 4294901760
    %1563 = vmatpush.msra.mxu0 %v1562
    %v1564 = vand.u32 %v51, 4294901760
    %1565 = vmatmul.f32.gmra.mxu0 %v1564
    %v1566 = vpop.f32.mrf.mxu0
    %v1567 = vadd.f32 %v1408, %v1566
    %v1568 = vand.u32 %v53, 4294901760
    %1569 = vmatmul.f32.gmra.mxu0 %v1568
    %v1570 = vpop.f32.mrf.mxu0
    %v1571 = vadd.f32 %v1414, %v1570
    %v1572 = vand.u32 %v55, 4294901760
    %1573 = vmatmul.f32.gmra.mxu0 %v1572
    %v1574 = vpop.f32.mrf.mxu0
    %v1575 = vadd.f32 %v1420, %v1574
    %v1576 = vand.u32 %v57, 4294901760
    %1577 = vmatmul.f32.gmra.mxu0 %v1576
    %v1578 = vpop.f32.mrf.mxu0
    %v1579 = vadd.f32 %v1426, %v1578
    %v1580 = vand.u32 %v59, 4294901760
    %1581 = vmatmul.f32.gmra.mxu0 %v1580
    %v1582 = vpop.f32.mrf.mxu0
    %v1583 = vadd.f32 %v1432, %v1582
    %v1584 = vand.u32 %v61, 4294901760
    %1585 = vmatmul.f32.gmra.mxu0 %v1584
    %v1586 = vpop.f32.mrf.mxu0
    %v1587 = vadd.f32 %v1438, %v1586
    %v1588 = vand.u32 %v63, 4294901760
    %1589 = vmatmul.f32.gmra.mxu0 %v1588
    %v1590 = vpop.f32.mrf.mxu0
    %v1591 = vadd.f32 %v1444, %v1590
    %v1592 = vand.u32 %v65, 4294901760
    %1593 = vmatmul.f32.gmra.mxu0 %v1592
    %v1594 = vpop.f32.mrf.mxu0
    %v1595 = vadd.f32 %v1450, %v1594
    %v1596 = vand.u32 %v67, 4294901760
    %1597 = vmatmul.f32.gmra.mxu0 %v1596
    %v1598 = vpop.f32.mrf.mxu0
    %v1599 = vadd.f32 %v1456, %v1598
    %v1600 = vand.u32 %v69, 4294901760
    %1601 = vmatmul.f32.gmra.mxu0 %v1600
    %v1602 = vpop.f32.mrf.mxu0
    %v1603 = vadd.f32 %v1462, %v1602
    %v1604 = vand.u32 %v71, 4294901760
    %1605 = vmatmul.f32.gmra.mxu0 %v1604
    %v1606 = vpop.f32.mrf.mxu0
    %v1607 = vadd.f32 %v1468, %v1606
    %v1608 = vand.u32 %v73, 4294901760
    %1609 = vmatmul.f32.gmra.mxu0 %v1608
    %v1610 = vpop.f32.mrf.mxu0
    %v1611 = vadd.f32 %v1474, %v1610
    %v1612 = vand.u32 %v75, 4294901760
    %1613 = vmatmul.f32.gmra.mxu0 %v1612
    %v1614 = vpop.f32.mrf.mxu0
    %v1615 = vadd.f32 %v1480, %v1614
    %v1616 = vand.u32 %v77, 4294901760
    %1617 = vmatmul.f32.gmra.mxu0 %v1616
    %v1618 = vpop.f32.mrf.mxu0
    %v1619 = vadd.f32 %v1486, %v1618
    %v1620 = vand.u32 %v79, 4294901760
    %1621 = vmatmul.f32.gmra.mxu0 %v1620
    %v1622 = vpop.f32.mrf.mxu0
    %v1623 = vadd.f32 %v1492, %v1622
    %v1624 = vand.u32 %v81, 4294901760
    %1625 = vmatmul.f32.gmra.mxu0 %v1624
    %v1626 = vpop.f32.mrf.mxu0
    %v1627 = vadd.f32 %v1498, %v1626
    %1628 = vdwg.mxu0
    %v1629 = vand.u32 %v113, 4294901760
    %1630 = vmatpush.msra.mxu0 %v1629
    %v1631 = vand.u32 %v112, 4294901760
    %1632 = vmatpush.msra.mxu0 %v1631
    %v1633 = vand.u32 %v111, 4294901760
    %1634 = vmatpush.msra.mxu0 %v1633
    %v1635 = vand.u32 %v110, 4294901760
    %1636 = vmatpush.msra.mxu0 %v1635
    %v1637 = vand.u32 %v109, 4294901760
    %1638 = vmatpush.msra.mxu0 %v1637
    %v1639 = vand.u32 %v108, 4294901760
    %1640 = vmatpush.msra.mxu0 %v1639
    %v1641 = vand.u32 %v107, 4294901760
    %1642 = vmatpush.msra.mxu0 %v1641
    %v1643 = vand.u32 %v106, 4294901760
    %1644 = vmatpush.msra.mxu0 %v1643
    %v1645 = vand.u32 %v105, 4294901760
    %1646 = vmatpush.msra.mxu0 %v1645
    %v1647 = vand.u32 %v104, 4294901760
    %1648 = vmatpush.msra.mxu0 %v1647
    %v1649 = vand.u32 %v103, 4294901760
    %1650 = vmatpush.msra.mxu0 %v1649
    %v1651 = vand.u32 %v102, 4294901760
    %1652 = vmatpush.msra.mxu0 %v1651
    %v1653 = vand.u32 %v101, 4294901760
    %1654 = vmatpush.msra.mxu0 %v1653
    %v1655 = vand.u32 %v100, 4294901760
    %1656 = vmatpush.msra.mxu0 %v1655
    %v1657 = vand.u32 %v99, 4294901760
    %1658 = vmatpush.msra.mxu0 %v1657
    %v1659 = vand.u32 %v98, 4294901760
    %1660 = vmatpush.msra.mxu0 %v1659
    %v1661 = vand.u32 %v51, 4294901760
    %1662 = vmatmul.f32.gmra.mxu0 %v1661
    %v1663 = vpop.f32.mrf.mxu0
    %v1664 = vadd.f32 %v1567, %v1663
    %v1665 = vand.u32 %v53, 4294901760
    %1666 = vmatmul.f32.gmra.mxu0 %v1665
    %v1667 = vpop.f32.mrf.mxu0
    %v1668 = vadd.f32 %v1571, %v1667
    %v1669 = vand.u32 %v55, 4294901760
    %1670 = vmatmul.f32.gmra.mxu0 %v1669
    %v1671 = vpop.f32.mrf.mxu0
    %v1672 = vadd.f32 %v1575, %v1671
    %v1673 = vand.u32 %v57, 4294901760
    %1674 = vmatmul.f32.gmra.mxu0 %v1673
    %v1675 = vpop.f32.mrf.mxu0
    %v1676 = vadd.f32 %v1579, %v1675
    %v1677 = vand.u32 %v59, 4294901760
    %1678 = vmatmul.f32.gmra.mxu0 %v1677
    %v1679 = vpop.f32.mrf.mxu0
    %v1680 = vadd.f32 %v1583, %v1679
    %v1681 = vand.u32 %v61, 4294901760
    %1682 = vmatmul.f32.gmra.mxu0 %v1681
    %v1683 = vpop.f32.mrf.mxu0
    %v1684 = vadd.f32 %v1587, %v1683
    %v1685 = vand.u32 %v63, 4294901760
    %1686 = vmatmul.f32.gmra.mxu0 %v1685
    %v1687 = vpop.f32.mrf.mxu0
    %v1688 = vadd.f32 %v1591, %v1687
    %v1689 = vand.u32 %v65, 4294901760
    %1690 = vmatmul.f32.gmra.mxu0 %v1689
    %v1691 = vpop.f32.mrf.mxu0
    %v1692 = vadd.f32 %v1595, %v1691
    %v1693 = vand.u32 %v67, 4294901760
    %1694 = vmatmul.f32.gmra.mxu0 %v1693
    %v1695 = vpop.f32.mrf.mxu0
    %v1696 = vadd.f32 %v1599, %v1695
    %v1697 = vand.u32 %v69, 4294901760
    %1698 = vmatmul.f32.gmra.mxu0 %v1697
    %v1699 = vpop.f32.mrf.mxu0
    %v1700 = vadd.f32 %v1603, %v1699
    %v1701 = vand.u32 %v71, 4294901760
    %1702 = vmatmul.f32.gmra.mxu0 %v1701
    %v1703 = vpop.f32.mrf.mxu0
    %v1704 = vadd.f32 %v1607, %v1703
    %v1705 = vand.u32 %v73, 4294901760
    %1706 = vmatmul.f32.gmra.mxu0 %v1705
    %v1707 = vpop.f32.mrf.mxu0
    %v1708 = vadd.f32 %v1611, %v1707
    %v1709 = vand.u32 %v75, 4294901760
    %1710 = vmatmul.f32.gmra.mxu0 %v1709
    %v1711 = vpop.f32.mrf.mxu0
    %v1712 = vadd.f32 %v1615, %v1711
    %v1713 = vand.u32 %v77, 4294901760
    %1714 = vmatmul.f32.gmra.mxu0 %v1713
    %v1715 = vpop.f32.mrf.mxu0
    %v1716 = vadd.f32 %v1619, %v1715
    %v1717 = vand.u32 %v79, 4294901760
    %1718 = vmatmul.f32.gmra.mxu0 %v1717
    %v1719 = vpop.f32.mrf.mxu0
    %v1720 = vadd.f32 %v1623, %v1719
    %v1721 = vand.u32 %v81, 4294901760
    %1722 = vmatmul.f32.gmra.mxu0 %v1721
    %v1723 = vpop.f32.mrf.mxu0
    %v1724 = vadd.f32 %v1627, %v1723
    %1725 = vdwg.mxu0
    %v1726 = vld [vmem:[%s2] sm:$0x1]
    %v1728 = vperm.slane %v1726, 0
    %v1730 = vmul.f32 %v1664, %v1728
    %v1731 = vmul.f32 %v1668, %v1728
    %v1732 = vmul.f32 %v1672, %v1728
    %v1733 = vmul.f32 %v1676, %v1728
    %v1734 = vmul.f32 %v1680, %v1728
    %v1735 = vmul.f32 %v1684, %v1728
    %v1736 = vmul.f32 %v1688, %v1728
    %v1737 = vmul.f32 %v1692, %v1728
    %v1738 = vmul.f32 %v1696, %v1728
    %v1739 = vmul.f32 %v1700, %v1728
    %v1740 = vmul.f32 %v1704, %v1728
    %v1741 = vmul.f32 %v1708, %v1728
    %v1742 = vmul.f32 %v1712, %v1728
    %v1743 = vmul.f32 %v1716, %v1728
    %v1744 = vmul.f32 %v1720, %v1728
    %v1745 = vmul.f32 %v1724, %v1728
    %v1746 = vld [vmem:[%s3] sm:$0x1]
    %v1748 = vperm.slane %v1746, 0
    %v1750 = vadd.f32 %v1730, %v1748
    %v1751 = vadd.f32 %v1731, %v1748
    %v1752 = vadd.f32 %v1732, %v1748
    %v1753 = vadd.f32 %v1733, %v1748
    %v1754 = vadd.f32 %v1734, %v1748
    %v1755 = vadd.f32 %v1735, %v1748
    %v1756 = vadd.f32 %v1736, %v1748
    %v1757 = vadd.f32 %v1737, %v1748
    %v1758 = vadd.f32 %v1738, %v1748
    %v1759 = vadd.f32 %v1739, %v1748
    %v1760 = vadd.f32 %v1740, %v1748
    %v1761 = vadd.f32 %v1741, %v1748
    %v1762 = vadd.f32 %v1742, %v1748
    %v1763 = vadd.f32 %v1743, %v1748
    %v1764 = vadd.f32 %v1744, %v1748
    %v1765 = vadd.f32 %v1745, %v1748
    %v1766 = vmax.f32 %v1750, 0.0
    %v1767 = vmax.f32 %v1751, 0.0
    %v1768 = vmax.f32 %v1752, 0.0
    %v1769 = vmax.f32 %v1753, 0.0
    %v1770 = vmax.f32 %v1754, 0.0
    %v1771 = vmax.f32 %v1755, 0.0
    %v1772 = vmax.f32 %v1756, 0.0
    %v1773 = vmax.f32 %v1757, 0.0
    %v1774 = vmax.f32 %v1758, 0.0
    %v1775 = vmax.f32 %v1759, 0.0
    %v1776 = vmax.f32 %v1760, 0.0
    %v1777 = vmax.f32 %v1761, 0.0
    %v1778 = vmax.f32 %v1762, 0.0
    %v1779 = vmax.f32 %v1763, 0.0
    %v1780 = vmax.f32 %v1764, 0.0
    %v1781 = vmax.f32 %v1765, 0.0
    %1782 = vst [vmem:[#allocation7] sm:$0xff] %v1766
    %1783 = vst [vmem:[#allocation7 + $0x8] sm:$0xff] %v1767
    %1784 = vst [vmem:[#allocation7 + $0x10] sm:$0xff] %v1768
    %1785 = vst [vmem:[#allocation7 + $0x18] sm:$0xff] %v1769
    %1786 = vst [vmem:[#allocation7 + $0x20] sm:$0xff] %v1770
    %1787 = vst [vmem:[#allocation7 + $0x28] sm:$0xff] %v1771
    %1788 = vst [vmem:[#allocation7 + $0x30] sm:$0xff] %v1772
    %1789 = vst [vmem:[#allocation7 + $0x38] sm:$0xff] %v1773
    %1790 = vst [vmem:[#allocation7 + $0x40] sm:$0xff] %v1774
    %1791 = vst [vmem:[#allocation7 + $0x48] sm:$0xff] %v1775
    %1792 = vst [vmem:[#allocation7 + $0x50] sm:$0xff] %v1776
    %1793 = vst [vmem:[#allocation7 + $0x58] sm:$0xff] %v1777
    %1794 = vst [vmem:[#allocation7 + $0x60] sm:$0xff] %v1778
    %1795 = vst [vmem:[#allocation7 + $0x68] sm:$0xff] %v1779
    %1796 = vst [vmem:[#allocation7 + $0x70] sm:$0xff] %v1780
    %1797 = vst [vmem:[#allocation7 + $0x78] sm:$0xff] %v1781
    // Predicated region
    $region26: #{tpu_custom_call.1} parent=1 // pred_check
      _
    $region27: #{tpu_custom_call.1} parent=1 // pred_check_branch
      %1799 = sbr.rel (0) target = $region29
    $region28: #{tpu_custom_call.1} parent=1 // pred_region
      %1801 = vsyncadd [#allocation4], 0
      %s1802 = sshll.u32 [#allocation7], 4
      %s1803 = int_to_ptr.vmem [resolvable:$true] %s1802
      %s1804 = sshll.u32 %s4, 4
      %s1805 = int_to_ptr.hbm [resolvable:$true] %s1804
      %1810 = dma.vmem_to_hbm [thread:$0]  %s1803, 2048, %s1805, [#allocation4], 128, 128, 8
    $region29: #{tpu_custom_call.1} parent=1 // pred_fallthru
      _
    // Predicated region
    $region30: #{tpu_custom_call.1} parent=1 // pred_check
      _
    $region31: #{tpu_custom_call.1} parent=1 // pred_check_branch
      %1812 = sbr.rel (0) target = $region33
    $region32: #{tpu_custom_call.1} parent=1 // pred_region
      %1814 = dma.done [#allocation4], 2048
    $region33: #{tpu_custom_call.1} parent=1 // pred_fallthru
      _
    %1815 = vsyncpa [#allocation3], 1
    %1816 = vsyncpa [#allocation6], 1
    %1817 = vsyncpa [#allocation4], 1

</llo_original>
